<compile_context>
chip_gen: v7x
topology: tpu7x:2x2x1
jax: 0.10.0
libtpu: 0.0.40
codegen_flags: <defaults>
</compile_context>

<pallas_src>
import functools

import numpy as np
import jax
import jax.numpy as jnp
from jax.experimental import pallas as pl
from jax.experimental.pallas import tpu as pltpu

HIDDEN = 32          # hidden_size
L = 6                # semiLocal_length
LL = L * L


def _semilocal_offsets():
    # torch.meshgrid(linspace(-L//2, L//2, L), ..., indexing='ij'), flattened k = i*L + j
    off = np.linspace((-L) // 2, L // 2, L, dtype=np.float32)
    sl_y = np.repeat(off, L)   # off[k // L]
    sl_x = np.tile(off, L)     # off[k %  L]
    return sl_x, sl_y


# --------------------------------------------------------------------------- #
# Pallas kernel: lane-dense one-hot gather on the MXU
# --------------------------------------------------------------------------- #
def _semilocal_gather_kernel(flat_ref, feat_ref, o_ref, *, hw, k_chunk):
    n = o_ref.shape[-1]                      # tp * LL, multiple of 128
    flat = flat_ref[0]                       # (1, n) int32 nearest-neighbour flat indices
    nchunks = hw // k_chunk

    def chunk_dot(base):
        # Transposed one-hot for this K chunk, consumed immediately by the MXU:
        # (C, k_chunk) @ (k_chunk, n) -> (C, n), lane-dense output.
        iota = jax.lax.broadcasted_iota(jnp.int32, (k_chunk, n), 0) + base
        onehot = (iota == flat).astype(jnp.float32)            # (k_chunk, n)
        if k_chunk == hw:
            feat_chunk = feat_ref[0]                            # (C, hw)
        else:
            feat_chunk = feat_ref[0, :, pl.ds(base, k_chunk)]   # (C, k_chunk)
        # TODO(synk): if the downstream decoder tolerates bf16 activations, cast
        # feat_chunk/onehot to bf16 here for single-pass MXU (exactness relaxed).
        return jnp.dot(feat_chunk, onehot, preferred_element_type=jnp.float32)

    o_ref[0] = chunk_dot(0)
    if nchunks > 1:
        if nchunks <= 8:                      # short fixed loop: static unroll
            for c in range(1, nchunks):
                o_ref[0] += chunk_dot(c * k_chunk)
        else:
            @pl.loop(1, nchunks)
            def _(c):
                o_ref[0] += chunk_dot(pl.multiple_of(c * k_chunk, k_chunk))


def _choose_k_chunk(hw):
    # Build-and-consume chunk along the H*W (K) axis of the one-hot.
    if hw <= 512:
        return hw
    for c in (512, 256, 128):
        if hw % c == 0:
            return c
    return hw      # irregular H*W: fall back to a single monolithic chunk


def _choose_tp(P, B, C, H, W):
    """Largest point tile (multiple of 32 so tp*LL % 128 == 0) whose working set
    fits a conservative scoped-VMEM budget; collapses the point axis by default."""
    hw = H * W
    k_chunk = _choose_k_chunk(hw)
    budget = 24 << 20                 # headroom under the 32 MiB scoped-VMEM limit we set

    tp = ((P + 31) // 32) * 32        # collapse the point axis by default

    def fits(t):
        nlanes = t * LL
        words = (2 * C * hw           # feature-map block (double-buffered)
                 + 2 * C * nlanes     # output block (double-buffered)
                 + 2 * nlanes         # flat-index block (double-buffered)
                 + k_chunk * nlanes   # transient one-hot chunk
                 + C * nlanes)        # live accumulator headroom
        return 4 * words <= budget

    while tp > 32 and not fits(tp):
        tp -= 32
    if B == 1 and P > 32:
        # v7x has two TensorCores; keep at least two parallel grid steps when B == 1.
        tp = min(tp, max(32, ((P + 63) // 64) * 32))
    return tp


def semilocal_gather(feat_nchw, flat_idx, *, tp=None):
    """feat_nchw: (B, C, H, W) f32; flat_idx: (B, P*LL) int32 flat H*W indices.

    Returns gathered features channel-first: (B, C, P, L, L).
    """
    B, C, H, W = feat_nchw.shape
    P = flat_idx.shape[1] // LL
    if tp is None:
        tp = _choose_tp(P, B, C, H, W)
    assert (tp * LL) % 128 == 0, "tp must be a multiple of 32 for lane-dense stores"

    P_pad = ((P + tp - 1) // tp) * tp
    if P_pad != P:
        # padded points gather index 0 (harmless) and are sliced off below
        flat_idx = jnp.pad(flat_idx, ((0, 0), (0, (P_pad - P) * LL)))

    flat_idx = flat_idx.reshape(B, 1, P_pad * LL)   # lane-dense int32 index row
    feat = feat_nchw.reshape(B, C, H * W)           # channels on sublanes, H*W on lanes
    k_chunk = _choose_k_chunk(H * W)

    kernel = functools.partial(_semilocal_gather_kernel, hw=H * W, k_chunk=k_chunk)
    out = pl.pallas_call(
        kernel,
        out_shape=jax.ShapeDtypeStruct((B, C, P_pad * LL), jnp.float32),
        grid=(B, P_pad // tp),
        in_specs=[
            pl.BlockSpec((1, 1, tp * LL), lambda b, p: (b, 0, p)),
            pl.BlockSpec((1, C, H * W), lambda b, p: (b, 0, 0)),   # grid-invariant in p
        ],
        out_specs=pl.BlockSpec((1, C, tp * LL), lambda b, p: (b, 0, p)),
        compiler_params=pltpu.CompilerParams(
            dimension_semantics=("parallel", "parallel"),
            vmem_limit_bytes=32 * 1024 * 1024),
    )(flat_idx, feat)

    return out.reshape(B, C, P_pad, L, L)[:, :, :P]    # (B, C, P, L, L)


# --------------------------------------------------------------------------- #
# OWSLR forward (defined parts)
# --------------------------------------------------------------------------- #
def owslr_forward(lr_img, hr_training_coordinates, cell, enc_w, enc_b):
    # TODO(synk): encoder_spec (models.make), OverlappingWindow and Decoder are not
    # defined in the reference source; the encoder below is a deterministic 1x1-conv
    # placeholder, and we return exactly the tensors those missing modules would
    # consume (sampled semi-local features, interspace coords, scaled cell).
    feat = jnp.einsum('bchw,cd->bdhw', lr_img, enc_w) + enc_b[None, :, None, None]
    B, C, H, W = feat.shape
    P = hr_training_coordinates.shape[1]

    # cell[..., 0] *= x.shape[-2]; cell[..., 1] *= x.shape[-1]
    cell = cell * jnp.asarray([H, W], dtype=cell.dtype)

    # --- semi-local coords / interspace / nearest indices: O(P*LL) plain JAX ---
    sl_x_np, sl_y_np = _semilocal_offsets()
    sl_x = jnp.asarray(sl_x_np)                   # (LL,)
    sl_y = jnp.asarray(sl_y_np)
    unit = jnp.float32(1.0 / W)                   # lr_unit_width == lr_unit_height == 1/x.shape[-1]
    eps = 1e-6
    # hr_training_coordinates.flip(-1): column 1 -> "m" (x dir), column 0 -> "n" (y dir)
    m = hr_training_coordinates[..., 1:2]         # (B, P, 1)
    n = hr_training_coordinates[..., 0:1]
    x = jnp.clip(m + sl_x * unit, -1.0 + eps, 1.0 - eps)   # (B, P, LL)
    y = jnp.clip(n + sl_y * unit, -1.0 + eps, 1.0 - eps)
    interspace = jnp.stack([m - x, n - y], axis=2).reshape(B * P, 2, L, L)

    # grid_sample(mode='nearest', align_corners=False): un-normalize, round-half-even
    ix = jnp.clip(jnp.round((x + 1.0) * (W * 0.5) - 0.5), 0, W - 1).astype(jnp.int32)
    iy = jnp.clip(jnp.round((y + 1.0) * (H * 0.5) - 0.5), 0, H - 1).astype(jnp.int32)
    flat_idx = (iy * W + ix).reshape(B, P * LL)

    # --- hot path: semi-local nearest-neighbour gather (Pallas kernel) ---
    sampled_cfirst = semilocal_gather(feat, flat_idx)       # (B, C, P, L, L)
    # TODO(synk): if the (undefined) decoder can consume channel-first (B,C,P,L,L),
    # this transpose can be dropped / folded into its first matmul layout.
    sampled = jnp.transpose(sampled_cfirst, (0, 2, 1, 3, 4)).reshape(B * P, C, L, L)

    cell = cell.reshape(-1, 2)
    return sampled, interspace, cell


if __name__ == "__main__":
    key = jax.random.PRNGKey(0)
    k1, k2, k3, k4 = jax.random.split(key, 4)

    B, H, W, P = 2, 16, 16, 64
    lr_img = jax.random.uniform(k1, (B, 3, H, W), jnp.float32)
    hr_coords = jax.random.uniform(k2, (B, P, 2), jnp.float32, minval=-1.0, maxval=1.0)
    cell = jnp.full((B, P, 2), 2.0 / (2 * H), dtype=jnp.float32)

    # deterministic placeholder encoder parameters (1x1 conv: 3 -> HIDDEN)
    enc_w = 0.1 * jax.random.normal(k3, (3, HIDDEN), jnp.float32)
    enc_b = 0.01 * jax.random.normal(k4, (HIDDEN,), jnp.float32)

    sampled, interspace, cell_out = owslr_forward(lr_img, hr_coords, cell, enc_w, enc_b)
    jax.block_until_ready((sampled, interspace, cell_out))

    assert sampled.shape == (B * P, HIDDEN, L, L)
    assert interspace.shape == (B * P, 2, L, L)
    assert cell_out.shape == (B * P, 2)

    # pure-JAX reference for the gather path (same rounding math, exact selection)
    feat = jnp.einsum('bchw,cd->bdhw', lr_img, enc_w) + enc_b[None, :, None, None]
    sl_x_np, sl_y_np = _semilocal_offsets()
    m = hr_coords[..., 1:2]
    n = hr_coords[..., 0:1]
    unit = 1.0 / W
    eps = 1e-6
    xg = jnp.clip(m + jnp.asarray(sl_x_np) * unit, -1.0 + eps, 1.0 - eps)
    yg = jnp.clip(n + jnp.asarray(sl_y_np) * unit, -1.0 + eps, 1.0 - eps)
    ix = jnp.clip(jnp.round((xg + 1.0) * (W * 0.5) - 0.5), 0, W - 1).astype(jnp.int32)
    iy = jnp.clip(jnp.round((yg + 1.0) * (H * 0.5) - 0.5), 0, H - 1).astype(jnp.int32)
    flat = (iy * W + ix).reshape(B, 1, P * LL)
    ref = jnp.take_along_axis(feat.reshape(B, HIDDEN, H * W), flat, axis=2)
    ref = ref.reshape(B, HIDDEN, P, L, L).transpose(0, 2, 1, 3, 4).reshape(B * P, HIDDEN, L, L)
    assert jnp.allclose(sampled, ref, atol=1e-4), "kernel gather mismatch vs reference"

    print("KERNEL_OK")
</pallas_src>

<mosaic_0001>
module attributes {stable_mosaic.version = 11 : i64} {
  func.func @_semilocal_gather_kernel(%arg0: i32, %arg1: i32, %arg2: memref<1x1x2304xi32, #tpu.memory_space<vmem>>, %arg3: memref<1x32x256xf32, #tpu.memory_space<vmem>>, %arg4: memref<1x32x2304xf32, #tpu.memory_space<vmem>>) attributes {dimension_semantics = [#tpu.dimension_semantics<parallel>, #tpu.dimension_semantics<parallel>], iteration_bounds = array<i64: 2, 1>, scalar_prefetch = 0 : i64, scratch_operands = 0 : i64, tpu.core_type = #tpu.core_type<tc>, window_params = [{transform_indices = @transform_0, window_bounds = array<i64: 1, 1, 2304>}, {transform_indices = @transform_1, window_bounds = array<i64: 1, 32, 256>}, {transform_indices = @transform_2, window_bounds = array<i64: 1, 32, 2304>}]} {
    %c0 = arith.constant 0 : index
    %c0_0 = arith.constant 0 : index
    %c0_1 = arith.constant 0 : index
    %0 = vector.load %arg2[%c0, %c0_0, %c0_1] : memref<1x1x2304xi32, #tpu.memory_space<vmem>>, vector<1x1x2304xi32>
    %1 = vector.shape_cast %0 : vector<1x1x2304xi32> to vector<1x2304xi32>
    %2 = tpu.iota {dimensions = array<i32: 0>} : vector<256x2304xi32>
    %c0_i32 = arith.constant 0 : i32
    %3 = vector.broadcast %c0_i32 : i32 to vector<256x2304xi32>
    %4 = arith.addi %2, %3 : vector<256x2304xi32>
    %5 = vector.broadcast %1 : vector<1x2304xi32> to vector<256x2304xi32>
    %6 = arith.cmpi eq, %4, %5 : vector<256x2304xi32>
    %7 = arith.extui %6 : vector<256x2304xi1> to vector<256x2304xi32>
    %8 = arith.sitofp %7 : vector<256x2304xi32> to vector<256x2304xf32>
    %c0_2 = arith.constant 0 : index
    %c0_3 = arith.constant 0 : index
    %c0_4 = arith.constant 0 : index
    %9 = vector.load %arg3[%c0_2, %c0_3, %c0_4] : memref<1x32x256xf32, #tpu.memory_space<vmem>>, vector<1x32x256xf32>
    %10 = vector.shape_cast %9 : vector<1x32x256xf32> to vector<32x256xf32>
    %cst = arith.constant dense<0.000000e+00> : vector<32x2304xf32>
    %11 = tpu.matmul %10, %8, %cst {dimension_numbers = #tpu.dot_dimension_numbers<[1], [0], [0], [1], [0, 0, 1, 1], [], []>} : vector<32x256xf32>, vector<256x2304xf32>, vector<32x2304xf32> -> vector<32x2304xf32>
    %c0_5 = arith.constant 0 : index
    %c0_6 = arith.constant 0 : index
    %c0_7 = arith.constant 0 : index
    %12 = vector.load %arg4[%c0_5, %c0_6, %c0_7] : memref<1x32x2304xf32, #tpu.memory_space<vmem>>, vector<1x32x2304xf32>
    %13 = vector.shape_cast %12 : vector<1x32x2304xf32> to vector<32x2304xf32>
    %14 = vector.shape_cast %11 : vector<32x2304xf32> to vector<1x32x2304xf32>
    tpu.vector_store %arg4[%c0_5, %c0_6, %c0_7], %14 {strides = array<i32>} : memref<1x32x2304xf32, #tpu.memory_space<vmem>>, vector<1x32x2304xf32>,
    return
  }
  func.func @transform_0(%arg0: i32, %arg1: i32) -> (i32, i32, i32) {
    %c0_i32 = arith.constant 0 : i32
    %c0_i32_0 = arith.constant 0 : i32
    return %arg0, %c0_i32, %arg1 : i32, i32, i32
  }
  func.func @transform_1(%arg0: i32, %arg1: i32) -> (i32, i32, i32) {
    %c0_i32 = arith.constant 0 : i32
    %c0_i32_0 = arith.constant 0 : i32
    %c0_i32_1 = arith.constant 0 : i32
    return %arg0, %c0_i32, %c0_i32_0 : i32, i32, i32
  }
  func.func @transform_2(%arg0: i32, %arg1: i32) -> (i32, i32, i32) {
    %c0_i32 = arith.constant 0 : i32
    %c0_i32_0 = arith.constant 0 : i32
    return %arg0, %c0_i32, %arg1 : i32, i32, i32
  }
}

</mosaic_0001>

<llo_original>
// kernel: tpu_custom_call.1
$region0: #{tpu_custom_call.1}
  #allocation0 [shape = 'u32[]', space=smem, size = 0x4, offset = 0x4, fixed_abs, tag = 'smem constant byte address 0x4 - core index']
  #allocation1 [shape = 'u32[144,128]{1,0:T(1,128)}', space=vmem, size = 0x12000, scoped, tag = 'internal scratch']
  %s0 = inlined_call_operand.hbm [shape: s32[2,1,2304], index: 0, kind: input, shape index: {}]
  %s1 = inlined_call_operand.hbm [shape: f32[2,32,256], index: 1, kind: input, shape index: {}]
  %s2 = inlined_call_operand.hbm [shape: f32[2,32,2304], index: 2, kind: output, shape index: {}]
  %s3 = sld [smem:[#allocation0]]
  $region49: #{tpu_custom_call.1} parent=0
    _
  %s5 = ssub.s32 1, %s3
  %s6 = scalar_select 0, %s5, %s3
  $region1: #{tpu_custom_call.1} parent=0
    #allocation2 [shape = 'u8[18432]{0}', space=vmem, size = 0x4800, scoped, tag = 'input window, operand 0']
    #allocation3 [shape = 's32[2]{0}', space=sflag, size = 0x8, scoped, tag = 'scoped memory for tpu_custom_call.1']
    #allocation4 [shape = 's32[2]{0}', space=sflag, size = 0x8, scoped, tag = 'scoped memory for tpu_custom_call.1']
    #allocation5 [shape = 'u8[65536]{0}', space=vmem, size = 0x10000, scoped, tag = 'input window, operand 1']
    #allocation6 [shape = 's32[2]{0}', space=sflag, size = 0x8, scoped, tag = 'scoped memory for tpu_custom_call.1']
    #allocation7 [shape = 'u8[589824]{0}', space=vmem, size = 0x90000, scoped, tag = 'output window, operand 0']
    %7 = vsyncpa [#allocation3], 0
    %s8 = scalar_lea.sflag [#allocation3], 1
    %9 = vsyncpa %s8, 0
    %10 = vsyncpa [#allocation6], 0
    %s11 = scalar_lea.sflag [#allocation6], 1
    %12 = vsyncpa %s11, 0
    %13 = vsyncpa [#allocation4], 0
    %s14 = scalar_lea.sflag [#allocation4], 1
    %15 = vsyncpa %s14, 0
    loop: start=0, step=1, limit=4
    $region2: #{tpu_custom_call.1} parent=1 // loop_pre_header
      _
    $region3: #{tpu_custom_call.1} parent=1 // loop_header
      %s17 = sphi 0, %s21
      %p18 = scmp.ge.s32.totalorder %s17, 4
      %s24 = sphi 0, %s36
      %s25 = sphi 0, %s32
      %s26 = sphi 0, %s24
      %s27 = sphi 0, %s25
      %s28 = sphi 0, %s26
      %s29 = sphi 0, %s27
      %s41 = sphi 0, %s43
      %s44 = sphi 0, %s41
      %s45 = sphi 0, %s44
      %s61 = sphi 0, %s45
      %s67 = sphi 0, %s69
      %s70 = sphi 0, %s67
      %s71 = sphi 0, %s70
      %s87 = sphi 0, %s71
      %s95 = sphi 0, %s97
      %s98 = sphi 0, %s95
      %s99 = sphi 0, %s98
      %s115 = sphi 0, %s99
    $region4: #{tpu_custom_call.1} parent=1 // loop_header_branch
      %20 = sbr.rel (%p18) target = $region8
    $region5: #{tpu_custom_call.1} parent=1 // loop_body
      %s22 = ssub.s32 %s17, 1
      %s23 = ssub.s32 %s17, 2
      %s30 = sadd.s32 1, %s25
      %p31 = scmp.ge.s32.totalorder %s30, 1
      %s32 = scalar_select %p31, 0, %s30
      %s33 = sadd.s32 1, %s24
      %s34 = scalar_select %p31, %s33, %s24
      %p35 = scmp.ge.s32.totalorder %s34, 2
      %s36 = scalar_select %p35, 0, %s34
      %s37 = ssub.s32 %s24, %s36
      %s38 = ssub.s32 %s25, %s32
      %s39 = sor.u32 %s37, %s38
      %p40 = scmp.eq.s32.totalorder %s39, 0
      %s42 = sadd.s32 %s41, 1
      %s43 = scalar_select %p40, %s41, %s42
      %p46 = pneg %p40
      %p47 = scmp.eq.s32.totalorder %s17, 1
      %p48 = por %p46, %p47
      %p49 = scmp.ne.s32.totalorder %s41, %s44
      %p50 = scmp.eq.s32.totalorder %s17, 0
      %p51 = por %p49, %p50
      %p52 = scmp.ne.s32.totalorder %s41, %s44
      %p53 = scmp.eq.s32.totalorder %s22, 1
      %p54 = por %p52, %p53
      %p55 = scmp.ne.s32.totalorder %s44, %s45
      %p56 = scmp.eq.s32.totalorder %s22, 0
      %p57 = por %p55, %p56
      %p58 = scmp.ne.s32.totalorder %s44, %s45
      %p59 = scmp.eq.s32.totalorder %s23, 1
      %p60 = por %p58, %p59
      %p62 = scmp.ne.s32.totalorder %s45, %s61
      %p63 = scmp.eq.s32.totalorder %s23, 0
      %p64 = por %p62, %p63
      %s65 = ssub.s32 %s24, %s36
      %p66 = scmp.eq.s32.totalorder %s65, 0
      %s68 = sadd.s32 %s67, 1
      %s69 = scalar_select %p66, %s67, %s68
      %p72 = pneg %p66
      %p73 = scmp.eq.s32.totalorder %s17, 1
      %p74 = por %p72, %p73
      %p75 = scmp.ne.s32.totalorder %s67, %s70
      %p76 = scmp.eq.s32.totalorder %s17, 0
      %p77 = por %p75, %p76
      %p78 = scmp.ne.s32.totalorder %s67, %s70
      %p79 = scmp.eq.s32.totalorder %s22, 1
      %p80 = por %p78, %p79
      %p81 = scmp.ne.s32.totalorder %s70, %s71
      %p82 = scmp.eq.s32.totalorder %s22, 0
      %p83 = por %p81, %p82
      %p84 = scmp.ne.s32.totalorder %s70, %s71
      %p85 = scmp.eq.s32.totalorder %s23, 1
      %p86 = por %p84, %p85
      %p88 = scmp.ne.s32.totalorder %s71, %s87
      %p89 = scmp.eq.s32.totalorder %s23, 0
      %p90 = por %p88, %p89
      %s91 = ssub.s32 %s24, %s36
      %s92 = ssub.s32 %s25, %s32
      %s93 = sor.u32 %s91, %s92
      %p94 = scmp.eq.s32.totalorder %s93, 0
      %s96 = sadd.s32 %s95, 1
      %s97 = scalar_select %p94, %s95, %s96
      %p100 = pneg %p94
      %p101 = scmp.eq.s32.totalorder %s17, 1
      %p102 = por %p100, %p101
      %p103 = scmp.ne.s32.totalorder %s95, %s98
      %p104 = scmp.eq.s32.totalorder %s17, 0
      %p105 = por %p103, %p104
      %p106 = scmp.ne.s32.totalorder %s95, %s98
      %p107 = scmp.eq.s32.totalorder %s22, 1
      %p108 = por %p106, %p107
      %p109 = scmp.ne.s32.totalorder %s98, %s99
      %p110 = scmp.eq.s32.totalorder %s22, 0
      %p111 = por %p109, %p110
      %p112 = scmp.ne.s32.totalorder %s98, %s99
      %p113 = scmp.eq.s32.totalorder %s23, 1
      %p114 = por %p112, %p113
      %p116 = scmp.ne.s32.totalorder %s99, %s115
      %p117 = scmp.eq.s32.totalorder %s23, 0
      %p118 = por %p116, %p117
      %p119 = scmp.le.s32.totalorder 1, %s17
      %p120 = scmp.lt.s32.totalorder %s17, 3
      %p121 = pnand %p119, %p120
      %p122 = pneg %p121
      // Predicated region
      $region9: #{tpu_custom_call.1} parent=5 // pred_check
        _
      $region10: #{tpu_custom_call.1} parent=5 // pred_check_branch
        %124 = sbr.rel (%p121) target = $region12
      $region11: #{tpu_custom_call.1} parent=5 // pred_region
        %s125 = ssub.s32 %s17, 1
      $region12: #{tpu_custom_call.1} parent=5 // pred_fallthru
        _
      %p126 = scmp.lt.s32.totalorder %s17, 2
      // Predicated region
      $region13: #{tpu_custom_call.1} parent=5 // pred_check
        %p127 = pneg %p126
      $region14: #{tpu_custom_call.1} parent=5 // pred_check_branch
        %129 = sbr.rel (%p127) target = $region16
      $region15: #{tpu_custom_call.1} parent=5 // pred_region
        // Predicated region
        $region17: #{tpu_custom_call.1} parent=15 // pred_check
          %p130 = pneg %p51
        $region18: #{tpu_custom_call.1} parent=15 // pred_check_branch
          %132 = sbr.rel (%p130) target = $region20
        $region19: #{tpu_custom_call.1} parent=15 // pred_region
          %s133 = sand.u32 %s41, 1
          %s134 = scalar_lea.sflag [#allocation3], %s133
          %s135 = sand.u32 %s41, 1
          %s136 = smul.addr %s135, 18
          %s137 = scalar_lea.vmem [#allocation2], %s136
          %s138 = smul.u32 18, %s25
          %s140 = ssub.s32 288, 288
          %141 = vsyncadd %s134, %s140
          %s142 = smul.addr %s24, 18
          %s143 = sadd.s32 %s138, %s142
          %s144 = smul.addr %s143, 16
          %s145 = scalar_lea.hbm %s0, %s144
          %s147 = sshll.u32 %s137, 4
          %s148 = int_to_ptr.vmem [resolvable:$true] %s147
          %150 = dma.hbm_to_vmem [thread:$0]  %s145, 288, %s148, %s134
        $region20: #{tpu_custom_call.1} parent=15 // pred_fallthru
          _
        // Predicated region
        $region21: #{tpu_custom_call.1} parent=15 // pred_check
          %p151 = pneg %p77
        $region22: #{tpu_custom_call.1} parent=15 // pred_check_branch
          %153 = sbr.rel (%p151) target = $region24
        $region23: #{tpu_custom_call.1} parent=15 // pred_region
          %s154 = sand.u32 %s67, 1
          %s155 = scalar_lea.sflag [#allocation6], %s154
          %s156 = sand.u32 %s67, 1
          %s157 = smul.addr %s156, 64
          %s158 = scalar_lea.vmem [#allocation5], %s157
          %s160 = ssub.s32 1024, 1024
          %161 = vsyncadd %s155, %s160
          %s162 = smul.addr %s24, 8
          %s163 = smul.addr %s162, 128
          %s164 = scalar_lea.hbm %s1, %s163
          %s165 = sshll.u32 %s158, 4
          %s166 = int_to_ptr.vmem [resolvable:$true] %s165
          %171 = dma.hbm_to_vmem [thread:$0]  %s164, 1024, %s166, %s155, 256, 256, 16
        $region24: #{tpu_custom_call.1} parent=15 // pred_fallthru
          _
      $region16: #{tpu_custom_call.1} parent=5 // pred_fallthru
        _
      %p172 = scmp.le.s32.totalorder 1, %s17
      %p173 = scmp.lt.s32.totalorder %s17, 3
      %p174 = pnand %p172, %p173
      %p175 = pneg %p174
      // Predicated region
      $region25: #{tpu_custom_call.1} parent=5 // pred_check
        _
      $region26: #{tpu_custom_call.1} parent=5 // pred_check_branch
        %177 = sbr.rel (%p174) target = $region28
      $region27: #{tpu_custom_call.1} parent=5 // pred_region
        %s178 = ssub.s32 %s17, 1
        %s179 = sand.u32 %s44, 1
        %s180 = scalar_lea.sflag [#allocation3], %s179
        %s181 = sand.u32 %s44, 1
        %s182 = smul.addr %s181, 18
        %s183 = scalar_lea.vmem [#allocation2], %s182
        // Predicated region
        $region29: #{tpu_custom_call.1} parent=27 // pred_check
          %p184 = pneg %p57
        $region30: #{tpu_custom_call.1} parent=27 // pred_check_branch
          %186 = sbr.rel (%p184) target = $region32
        $region31: #{tpu_custom_call.1} parent=27 // pred_region
          %187 = dma.done %s180, 288
        $region32: #{tpu_custom_call.1} parent=27 // pred_fallthru
          _
        %s188 = sand.u32 %s70, 1
        %s189 = scalar_lea.sflag [#allocation6], %s188
        %s190 = sand.u32 %s70, 1
        %s191 = smul.addr %s190, 64
        %s192 = scalar_lea.vmem [#allocation5], %s191
        // Predicated region
        $region33: #{tpu_custom_call.1} parent=27 // pred_check
          %p193 = pneg %p83
        $region34: #{tpu_custom_call.1} parent=27 // pred_check_branch
          %195 = sbr.rel (%p193) target = $region36
        $region35: #{tpu_custom_call.1} parent=27 // pred_region
          %196 = dma.done %s189, 1024
        $region36: #{tpu_custom_call.1} parent=27 // pred_fallthru
          _
        %s197 = sand.u32 %s44, 1
        %s198 = scalar_lea.sflag [#allocation3], %s197
        %s199 = sand.u32 %s44, 1
        %s200 = smul.addr %s199, 18
        %s201 = scalar_lea.vmem [#allocation2], %s200
        %p202 = pneg %p57
        %p203 = pneg %p54
        %s204 = sand.u32 %s70, 1
        %s205 = scalar_lea.sflag [#allocation6], %s204
        %s206 = sand.u32 %s70, 1
        %s207 = smul.addr %s206, 64
        %s208 = scalar_lea.vmem [#allocation5], %s207
        %p209 = pneg %p83
        %p210 = pneg %p80
        %p211 = pneg %p111
        %p212 = pneg %p108
        %s213 = sand.u32 %s98, 1
        %s214 = scalar_lea.sflag [#allocation4], %s213
        %s215 = sand.u32 %s98, 1
        %s216 = smul.addr %s215, 576
        %s217 = scalar_lea.vmem [#allocation7], %s216
        %s218 = smul.u32 18, %s27
        %s219 = smul.u32 18, %s27
        %v220 = vld [vmem:[%s183] sm:$0xff]
        %v221 = vld [vmem:[%s183 + $0x8] sm:$0xff]
        %v222 = vld [vmem:[%s183 + $0x10] sm:$0x3]
        %v223 = vlaneseq
        %v224 = vshrl.u32 %v223, 7
        %v225 = vadd.s32 %v224, 8
        %v226 = vadd.s32 %v224, 16
        %v227 = vadd.s32 %v224, 24
        %v228 = vadd.s32 %v224, 32
        %v229 = vadd.s32 %v224, 40
        %v230 = vadd.s32 %v224, 48
        %v231 = vadd.s32 %v224, 56
        %v232 = vadd.s32 %v224, 64
        %v233 = vadd.s32 %v224, 72
        %v234 = vadd.s32 %v224, 80
        %v235 = vadd.s32 %v224, 88
        %v236 = vadd.s32 %v224, 96
        %v237 = vadd.s32 %v224, 104
        %v238 = vadd.s32 %v224, 112
        %v239 = vadd.s32 %v224, 120
        %v240 = vadd.s32 %v224, 128
        %v241 = vadd.s32 %v224, 136
        %v242 = vadd.s32 %v224, 144
        %v243 = vadd.s32 %v224, 152
        %v244 = vadd.s32 %v224, 160
        %v245 = vadd.s32 %v224, 168
        %v246 = vadd.s32 %v224, 176
        %v247 = vadd.s32 %v224, 184
        %v248 = vadd.s32 %v224, 192
        %v249 = vadd.s32 %v224, 200
        %v250 = vadd.s32 %v224, 208
        %v251 = vadd.s32 %v224, 216
        %v252 = vadd.s32 %v224, 224
        %v253 = vadd.s32 %v224, 232
        %v254 = vadd.s32 %v224, 240
        %v255 = vadd.s32 %v224, 248
        %v256 = vlaneseq
        %v257 = vshrl.u32 %v256, 7
        %v258 = vsub.s32 0, %v257
        %v259 = vrot.slane %v220, %v258
        %v260 = vlaneseq
        %v261 = vshrl.u32 %v260, 7
        %v262 = vsub.s32 1, %v261
        %v263 = vrot.slane %v220, %v262
        %v264 = vlaneseq
        %v265 = vshrl.u32 %v264, 7
        %v266 = vsub.s32 2, %v265
        %v267 = vrot.slane %v220, %v266
        %v268 = vlaneseq
        %v269 = vshrl.u32 %v268, 7
        %v270 = vsub.s32 3, %v269
        %v271 = vrot.slane %v220, %v270
        %v272 = vlaneseq
        %v273 = vshrl.u32 %v272, 7
        %v274 = vsub.s32 4, %v273
        %v275 = vrot.slane %v220, %v274
        %v276 = vlaneseq
        %v277 = vshrl.u32 %v276, 7
        %v278 = vsub.s32 5, %v277
        %v279 = vrot.slane %v220, %v278
        %v280 = vlaneseq
        %v281 = vshrl.u32 %v280, 7
        %v282 = vsub.s32 6, %v281
        %v283 = vrot.slane %v220, %v282
        %v284 = vlaneseq
        %v285 = vshrl.u32 %v284, 7
        %v286 = vsub.s32 7, %v285
        %v287 = vrot.slane %v220, %v286
        %v288 = vlaneseq
        %v289 = vshrl.u32 %v288, 7
        %v290 = vsub.s32 0, %v289
        %v291 = vrot.slane %v221, %v290
        %v292 = vlaneseq
        %v293 = vshrl.u32 %v292, 7
        %v294 = vsub.s32 1, %v293
        %v295 = vrot.slane %v221, %v294
        %v296 = vlaneseq
        %v297 = vshrl.u32 %v296, 7
        %v298 = vsub.s32 2, %v297
        %v299 = vrot.slane %v221, %v298
        %v300 = vlaneseq
        %v301 = vshrl.u32 %v300, 7
        %v302 = vsub.s32 3, %v301
        %v303 = vrot.slane %v221, %v302
        %v304 = vlaneseq
        %v305 = vshrl.u32 %v304, 7
        %v306 = vsub.s32 4, %v305
        %v307 = vrot.slane %v221, %v306
        %v308 = vlaneseq
        %v309 = vshrl.u32 %v308, 7
        %v310 = vsub.s32 5, %v309
        %v311 = vrot.slane %v221, %v310
        %v312 = vlaneseq
        %v313 = vshrl.u32 %v312, 7
        %v314 = vsub.s32 6, %v313
        %v315 = vrot.slane %v221, %v314
        %v316 = vlaneseq
        %v317 = vshrl.u32 %v316, 7
        %v318 = vsub.s32 7, %v317
        %v319 = vrot.slane %v221, %v318
        %v320 = vlaneseq
        %v321 = vshrl.u32 %v320, 7
        %v322 = vsub.s32 0, %v321
        %v323 = vrot.slane %v222, %v322
        %v324 = vlaneseq
        %v325 = vshrl.u32 %v324, 7
        %v326 = vsub.s32 1, %v325
        %v327 = vrot.slane %v222, %v326
        %vm328 = vcmp.eq.s32.totalorder %v224, %v259
        %vm329 = vcmp.eq.s32.totalorder %v224, %v263
        %vm330 = vcmp.eq.s32.totalorder %v224, %v267
        %vm331 = vcmp.eq.s32.totalorder %v224, %v271
        %vm332 = vcmp.eq.s32.totalorder %v224, %v275
        %vm333 = vcmp.eq.s32.totalorder %v224, %v279
        %vm334 = vcmp.eq.s32.totalorder %v224, %v283
        %vm335 = vcmp.eq.s32.totalorder %v224, %v287
        %vm336 = vcmp.eq.s32.totalorder %v224, %v291
        %vm337 = vcmp.eq.s32.totalorder %v224, %v295
        %vm338 = vcmp.eq.s32.totalorder %v224, %v299
        %vm339 = vcmp.eq.s32.totalorder %v224, %v303
        %vm340 = vcmp.eq.s32.totalorder %v224, %v307
        %vm341 = vcmp.eq.s32.totalorder %v224, %v311
        %vm342 = vcmp.eq.s32.totalorder %v224, %v315
        %vm343 = vcmp.eq.s32.totalorder %v224, %v319
        %vm344 = vcmp.eq.s32.totalorder %v224, %v323
        %vm345 = vcmp.eq.s32.totalorder %v224, %v327
        %vm346 = vcmp.eq.s32.totalorder %v225, %v259
        %vm347 = vcmp.eq.s32.totalorder %v225, %v263
        %vm348 = vcmp.eq.s32.totalorder %v225, %v267
        %vm349 = vcmp.eq.s32.totalorder %v225, %v271
        %vm350 = vcmp.eq.s32.totalorder %v225, %v275
        %vm351 = vcmp.eq.s32.totalorder %v225, %v279
        %vm352 = vcmp.eq.s32.totalorder %v225, %v283
        %vm353 = vcmp.eq.s32.totalorder %v225, %v287
        %vm354 = vcmp.eq.s32.totalorder %v225, %v291
        %vm355 = vcmp.eq.s32.totalorder %v225, %v295
        %vm356 = vcmp.eq.s32.totalorder %v225, %v299
        %vm357 = vcmp.eq.s32.totalorder %v225, %v303
        %vm358 = vcmp.eq.s32.totalorder %v225, %v307
        %vm359 = vcmp.eq.s32.totalorder %v225, %v311
        %vm360 = vcmp.eq.s32.totalorder %v225, %v315
        %vm361 = vcmp.eq.s32.totalorder %v225, %v319
        %vm362 = vcmp.eq.s32.totalorder %v225, %v323
        %vm363 = vcmp.eq.s32.totalorder %v225, %v327
        %vm364 = vcmp.eq.s32.totalorder %v226, %v259
        %vm365 = vcmp.eq.s32.totalorder %v226, %v263
        %vm366 = vcmp.eq.s32.totalorder %v226, %v267
        %vm367 = vcmp.eq.s32.totalorder %v226, %v271
        %vm368 = vcmp.eq.s32.totalorder %v226, %v275
        %vm369 = vcmp.eq.s32.totalorder %v226, %v279
        %vm370 = vcmp.eq.s32.totalorder %v226, %v283
        %vm371 = vcmp.eq.s32.totalorder %v226, %v287
        %vm372 = vcmp.eq.s32.totalorder %v226, %v291
        %vm373 = vcmp.eq.s32.totalorder %v226, %v295
        %vm374 = vcmp.eq.s32.totalorder %v226, %v299
        %vm375 = vcmp.eq.s32.totalorder %v226, %v303
        %vm376 = vcmp.eq.s32.totalorder %v226, %v307
        %vm377 = vcmp.eq.s32.totalorder %v226, %v311
        %vm378 = vcmp.eq.s32.totalorder %v226, %v315
        %vm379 = vcmp.eq.s32.totalorder %v226, %v319
        %vm380 = vcmp.eq.s32.totalorder %v226, %v323
        %vm381 = vcmp.eq.s32.totalorder %v226, %v327
        %vm382 = vcmp.eq.s32.totalorder %v227, %v259
        %vm383 = vcmp.eq.s32.totalorder %v227, %v263
        %vm384 = vcmp.eq.s32.totalorder %v227, %v267
        %vm385 = vcmp.eq.s32.totalorder %v227, %v271
        %vm386 = vcmp.eq.s32.totalorder %v227, %v275
        %vm387 = vcmp.eq.s32.totalorder %v227, %v279
        %vm388 = vcmp.eq.s32.totalorder %v227, %v283
        %vm389 = vcmp.eq.s32.totalorder %v227, %v287
        %vm390 = vcmp.eq.s32.totalorder %v227, %v291
        %vm391 = vcmp.eq.s32.totalorder %v227, %v295
        %vm392 = vcmp.eq.s32.totalorder %v227, %v299
        %vm393 = vcmp.eq.s32.totalorder %v227, %v303
        %vm394 = vcmp.eq.s32.totalorder %v227, %v307
        %vm395 = vcmp.eq.s32.totalorder %v227, %v311
        %vm396 = vcmp.eq.s32.totalorder %v227, %v315
        %vm397 = vcmp.eq.s32.totalorder %v227, %v319
        %vm398 = vcmp.eq.s32.totalorder %v227, %v323
        %vm399 = vcmp.eq.s32.totalorder %v227, %v327
        %vm400 = vcmp.eq.s32.totalorder %v228, %v259
        %vm401 = vcmp.eq.s32.totalorder %v228, %v263
        %vm402 = vcmp.eq.s32.totalorder %v228, %v267
        %vm403 = vcmp.eq.s32.totalorder %v228, %v271
        %vm404 = vcmp.eq.s32.totalorder %v228, %v275
        %vm405 = vcmp.eq.s32.totalorder %v228, %v279
        %vm406 = vcmp.eq.s32.totalorder %v228, %v283
        %vm407 = vcmp.eq.s32.totalorder %v228, %v287
        %vm408 = vcmp.eq.s32.totalorder %v228, %v291
        %vm409 = vcmp.eq.s32.totalorder %v228, %v295
        %vm410 = vcmp.eq.s32.totalorder %v228, %v299
        %vm411 = vcmp.eq.s32.totalorder %v228, %v303
        %vm412 = vcmp.eq.s32.totalorder %v228, %v307
        %vm413 = vcmp.eq.s32.totalorder %v228, %v311
        %vm414 = vcmp.eq.s32.totalorder %v228, %v315
        %vm415 = vcmp.eq.s32.totalorder %v228, %v319
        %vm416 = vcmp.eq.s32.totalorder %v228, %v323
        %vm417 = vcmp.eq.s32.totalorder %v228, %v327
        %vm418 = vcmp.eq.s32.totalorder %v229, %v259
        %vm419 = vcmp.eq.s32.totalorder %v229, %v263
        %vm420 = vcmp.eq.s32.totalorder %v229, %v267
        %vm421 = vcmp.eq.s32.totalorder %v229, %v271
        %vm422 = vcmp.eq.s32.totalorder %v229, %v275
        %vm423 = vcmp.eq.s32.totalorder %v229, %v279
        %vm424 = vcmp.eq.s32.totalorder %v229, %v283
        %vm425 = vcmp.eq.s32.totalorder %v229, %v287
        %vm426 = vcmp.eq.s32.totalorder %v229, %v291
        %vm427 = vcmp.eq.s32.totalorder %v229, %v295
        %vm428 = vcmp.eq.s32.totalorder %v229, %v299
        %vm429 = vcmp.eq.s32.totalorder %v229, %v303
        %vm430 = vcmp.eq.s32.totalorder %v229, %v307
        %vm431 = vcmp.eq.s32.totalorder %v229, %v311
        %vm432 = vcmp.eq.s32.totalorder %v229, %v315
        %vm433 = vcmp.eq.s32.totalorder %v229, %v319
        %vm434 = vcmp.eq.s32.totalorder %v229, %v323
        %vm435 = vcmp.eq.s32.totalorder %v229, %v327
        %vm436 = vcmp.eq.s32.totalorder %v230, %v259
        %vm437 = vcmp.eq.s32.totalorder %v230, %v263
        %vm438 = vcmp.eq.s32.totalorder %v230, %v267
        %vm439 = vcmp.eq.s32.totalorder %v230, %v271
        %vm440 = vcmp.eq.s32.totalorder %v230, %v275
        %vm441 = vcmp.eq.s32.totalorder %v230, %v279
        %vm442 = vcmp.eq.s32.totalorder %v230, %v283
        %vm443 = vcmp.eq.s32.totalorder %v230, %v287
        %vm444 = vcmp.eq.s32.totalorder %v230, %v291
        %vm445 = vcmp.eq.s32.totalorder %v230, %v295
        %vm446 = vcmp.eq.s32.totalorder %v230, %v299
        %vm447 = vcmp.eq.s32.totalorder %v230, %v303
        %vm448 = vcmp.eq.s32.totalorder %v230, %v307
        %vm449 = vcmp.eq.s32.totalorder %v230, %v311
        %vm450 = vcmp.eq.s32.totalorder %v230, %v315
        %vm451 = vcmp.eq.s32.totalorder %v230, %v319
        %vm452 = vcmp.eq.s32.totalorder %v230, %v323
        %vm453 = vcmp.eq.s32.totalorder %v230, %v327
        %vm454 = vcmp.eq.s32.totalorder %v231, %v259
        %vm455 = vcmp.eq.s32.totalorder %v231, %v263
        %vm456 = vcmp.eq.s32.totalorder %v231, %v267
        %vm457 = vcmp.eq.s32.totalorder %v231, %v271
        %vm458 = vcmp.eq.s32.totalorder %v231, %v275
        %vm459 = vcmp.eq.s32.totalorder %v231, %v279
        %vm460 = vcmp.eq.s32.totalorder %v231, %v283
        %vm461 = vcmp.eq.s32.totalorder %v231, %v287
        %vm462 = vcmp.eq.s32.totalorder %v231, %v291
        %vm463 = vcmp.eq.s32.totalorder %v231, %v295
        %vm464 = vcmp.eq.s32.totalorder %v231, %v299
        %vm465 = vcmp.eq.s32.totalorder %v231, %v303
        %vm466 = vcmp.eq.s32.totalorder %v231, %v307
        %vm467 = vcmp.eq.s32.totalorder %v231, %v311
        %vm468 = vcmp.eq.s32.totalorder %v231, %v315
        %vm469 = vcmp.eq.s32.totalorder %v231, %v319
        %vm470 = vcmp.eq.s32.totalorder %v231, %v323
        %vm471 = vcmp.eq.s32.totalorder %v231, %v327
        %vm472 = vcmp.eq.s32.totalorder %v232, %v259
        %vm473 = vcmp.eq.s32.totalorder %v232, %v263
        %vm474 = vcmp.eq.s32.totalorder %v232, %v267
        %vm475 = vcmp.eq.s32.totalorder %v232, %v271
        %vm476 = vcmp.eq.s32.totalorder %v232, %v275
        %vm477 = vcmp.eq.s32.totalorder %v232, %v279
        %vm478 = vcmp.eq.s32.totalorder %v232, %v283
        %vm479 = vcmp.eq.s32.totalorder %v232, %v287
        %vm480 = vcmp.eq.s32.totalorder %v232, %v291
        %vm481 = vcmp.eq.s32.totalorder %v232, %v295
        %vm482 = vcmp.eq.s32.totalorder %v232, %v299
        %vm483 = vcmp.eq.s32.totalorder %v232, %v303
        %vm484 = vcmp.eq.s32.totalorder %v232, %v307
        %vm485 = vcmp.eq.s32.totalorder %v232, %v311
        %vm486 = vcmp.eq.s32.totalorder %v232, %v315
        %vm487 = vcmp.eq.s32.totalorder %v232, %v319
        %vm488 = vcmp.eq.s32.totalorder %v232, %v323
        %vm489 = vcmp.eq.s32.totalorder %v232, %v327
        %vm490 = vcmp.eq.s32.totalorder %v233, %v259
        %vm491 = vcmp.eq.s32.totalorder %v233, %v263
        %vm492 = vcmp.eq.s32.totalorder %v233, %v267
        %vm493 = vcmp.eq.s32.totalorder %v233, %v271
        %vm494 = vcmp.eq.s32.totalorder %v233, %v275
        %vm495 = vcmp.eq.s32.totalorder %v233, %v279
        %vm496 = vcmp.eq.s32.totalorder %v233, %v283
        %vm497 = vcmp.eq.s32.totalorder %v233, %v287
        %vm498 = vcmp.eq.s32.totalorder %v233, %v291
        %vm499 = vcmp.eq.s32.totalorder %v233, %v295
        %vm500 = vcmp.eq.s32.totalorder %v233, %v299
        %vm501 = vcmp.eq.s32.totalorder %v233, %v303
        %vm502 = vcmp.eq.s32.totalorder %v233, %v307
        %vm503 = vcmp.eq.s32.totalorder %v233, %v311
        %vm504 = vcmp.eq.s32.totalorder %v233, %v315
        %vm505 = vcmp.eq.s32.totalorder %v233, %v319
        %vm506 = vcmp.eq.s32.totalorder %v233, %v323
        %vm507 = vcmp.eq.s32.totalorder %v233, %v327
        %vm508 = vcmp.eq.s32.totalorder %v234, %v259
        %vm509 = vcmp.eq.s32.totalorder %v234, %v263
        %vm510 = vcmp.eq.s32.totalorder %v234, %v267
        %vm511 = vcmp.eq.s32.totalorder %v234, %v271
        %vm512 = vcmp.eq.s32.totalorder %v234, %v275
        %vm513 = vcmp.eq.s32.totalorder %v234, %v279
        %vm514 = vcmp.eq.s32.totalorder %v234, %v283
        %vm515 = vcmp.eq.s32.totalorder %v234, %v287
        %vm516 = vcmp.eq.s32.totalorder %v234, %v291
        %vm517 = vcmp.eq.s32.totalorder %v234, %v295
        %vm518 = vcmp.eq.s32.totalorder %v234, %v299
        %vm519 = vcmp.eq.s32.totalorder %v234, %v303
        %vm520 = vcmp.eq.s32.totalorder %v234, %v307
        %vm521 = vcmp.eq.s32.totalorder %v234, %v311
        %vm522 = vcmp.eq.s32.totalorder %v234, %v315
        %vm523 = vcmp.eq.s32.totalorder %v234, %v319
        %vm524 = vcmp.eq.s32.totalorder %v234, %v323
        %vm525 = vcmp.eq.s32.totalorder %v234, %v327
        %vm526 = vcmp.eq.s32.totalorder %v235, %v259
        %vm527 = vcmp.eq.s32.totalorder %v235, %v263
        %vm528 = vcmp.eq.s32.totalorder %v235, %v267
        %vm529 = vcmp.eq.s32.totalorder %v235, %v271
        %vm530 = vcmp.eq.s32.totalorder %v235, %v275
        %vm531 = vcmp.eq.s32.totalorder %v235, %v279
        %vm532 = vcmp.eq.s32.totalorder %v235, %v283
        %vm533 = vcmp.eq.s32.totalorder %v235, %v287
        %vm534 = vcmp.eq.s32.totalorder %v235, %v291
        %vm535 = vcmp.eq.s32.totalorder %v235, %v295
        %vm536 = vcmp.eq.s32.totalorder %v235, %v299
        %vm537 = vcmp.eq.s32.totalorder %v235, %v303
        %vm538 = vcmp.eq.s32.totalorder %v235, %v307
        %vm539 = vcmp.eq.s32.totalorder %v235, %v311
        %vm540 = vcmp.eq.s32.totalorder %v235, %v315
        %vm541 = vcmp.eq.s32.totalorder %v235, %v319
        %vm542 = vcmp.eq.s32.totalorder %v235, %v323
        %vm543 = vcmp.eq.s32.totalorder %v235, %v327
        %vm544 = vcmp.eq.s32.totalorder %v236, %v259
        %vm545 = vcmp.eq.s32.totalorder %v236, %v263
        %vm546 = vcmp.eq.s32.totalorder %v236, %v267
        %vm547 = vcmp.eq.s32.totalorder %v236, %v271
        %vm548 = vcmp.eq.s32.totalorder %v236, %v275
        %vm549 = vcmp.eq.s32.totalorder %v236, %v279
        %vm550 = vcmp.eq.s32.totalorder %v236, %v283
        %vm551 = vcmp.eq.s32.totalorder %v236, %v287
        %vm552 = vcmp.eq.s32.totalorder %v236, %v291
        %vm553 = vcmp.eq.s32.totalorder %v236, %v295
        %vm554 = vcmp.eq.s32.totalorder %v236, %v299
        %vm555 = vcmp.eq.s32.totalorder %v236, %v303
        %vm556 = vcmp.eq.s32.totalorder %v236, %v307
        %vm557 = vcmp.eq.s32.totalorder %v236, %v311
        %vm558 = vcmp.eq.s32.totalorder %v236, %v315
        %vm559 = vcmp.eq.s32.totalorder %v236, %v319
        %vm560 = vcmp.eq.s32.totalorder %v236, %v323
        %vm561 = vcmp.eq.s32.totalorder %v236, %v327
        %vm562 = vcmp.eq.s32.totalorder %v237, %v259
        %vm563 = vcmp.eq.s32.totalorder %v237, %v263
        %vm564 = vcmp.eq.s32.totalorder %v237, %v267
        %vm565 = vcmp.eq.s32.totalorder %v237, %v271
        %vm566 = vcmp.eq.s32.totalorder %v237, %v275
        %vm567 = vcmp.eq.s32.totalorder %v237, %v279
        %vm568 = vcmp.eq.s32.totalorder %v237, %v283
        %vm569 = vcmp.eq.s32.totalorder %v237, %v287
        %vm570 = vcmp.eq.s32.totalorder %v237, %v291
        %vm571 = vcmp.eq.s32.totalorder %v237, %v295
        %vm572 = vcmp.eq.s32.totalorder %v237, %v299
        %vm573 = vcmp.eq.s32.totalorder %v237, %v303
        %vm574 = vcmp.eq.s32.totalorder %v237, %v307
        %vm575 = vcmp.eq.s32.totalorder %v237, %v311
        %vm576 = vcmp.eq.s32.totalorder %v237, %v315
        %vm577 = vcmp.eq.s32.totalorder %v237, %v319
        %vm578 = vcmp.eq.s32.totalorder %v237, %v323
        %vm579 = vcmp.eq.s32.totalorder %v237, %v327
        %vm580 = vcmp.eq.s32.totalorder %v238, %v259
        %vm581 = vcmp.eq.s32.totalorder %v238, %v263
        %vm582 = vcmp.eq.s32.totalorder %v238, %v267
        %vm583 = vcmp.eq.s32.totalorder %v238, %v271
        %vm584 = vcmp.eq.s32.totalorder %v238, %v275
        %vm585 = vcmp.eq.s32.totalorder %v238, %v279
        %vm586 = vcmp.eq.s32.totalorder %v238, %v283
        %vm587 = vcmp.eq.s32.totalorder %v238, %v287
        %vm588 = vcmp.eq.s32.totalorder %v238, %v291
        %vm589 = vcmp.eq.s32.totalorder %v238, %v295
        %vm590 = vcmp.eq.s32.totalorder %v238, %v299
        %vm591 = vcmp.eq.s32.totalorder %v238, %v303
        %vm592 = vcmp.eq.s32.totalorder %v238, %v307
        %vm593 = vcmp.eq.s32.totalorder %v238, %v311
        %vm594 = vcmp.eq.s32.totalorder %v238, %v315
        %vm595 = vcmp.eq.s32.totalorder %v238, %v319
        %vm596 = vcmp.eq.s32.totalorder %v238, %v323
        %vm597 = vcmp.eq.s32.totalorder %v238, %v327
        %vm598 = vcmp.eq.s32.totalorder %v239, %v259
        %vm599 = vcmp.eq.s32.totalorder %v239, %v263
        %vm600 = vcmp.eq.s32.totalorder %v239, %v267
        %vm601 = vcmp.eq.s32.totalorder %v239, %v271
        %vm602 = vcmp.eq.s32.totalorder %v239, %v275
        %vm603 = vcmp.eq.s32.totalorder %v239, %v279
        %vm604 = vcmp.eq.s32.totalorder %v239, %v283
        %vm605 = vcmp.eq.s32.totalorder %v239, %v287
        %vm606 = vcmp.eq.s32.totalorder %v239, %v291
        %vm607 = vcmp.eq.s32.totalorder %v239, %v295
        %vm608 = vcmp.eq.s32.totalorder %v239, %v299
        %vm609 = vcmp.eq.s32.totalorder %v239, %v303
        %vm610 = vcmp.eq.s32.totalorder %v239, %v307
        %vm611 = vcmp.eq.s32.totalorder %v239, %v311
        %vm612 = vcmp.eq.s32.totalorder %v239, %v315
        %vm613 = vcmp.eq.s32.totalorder %v239, %v319
        %vm614 = vcmp.eq.s32.totalorder %v239, %v323
        %vm615 = vcmp.eq.s32.totalorder %v239, %v327
        %vm616 = vcmp.eq.s32.totalorder %v240, %v259
        %vm617 = vcmp.eq.s32.totalorder %v240, %v263
        %vm618 = vcmp.eq.s32.totalorder %v240, %v267
        %vm619 = vcmp.eq.s32.totalorder %v240, %v271
        %vm620 = vcmp.eq.s32.totalorder %v240, %v275
        %vm621 = vcmp.eq.s32.totalorder %v240, %v279
        %vm622 = vcmp.eq.s32.totalorder %v240, %v283
        %vm623 = vcmp.eq.s32.totalorder %v240, %v287
        %vm624 = vcmp.eq.s32.totalorder %v240, %v291
        %vm625 = vcmp.eq.s32.totalorder %v240, %v295
        %vm626 = vcmp.eq.s32.totalorder %v240, %v299
        %vm627 = vcmp.eq.s32.totalorder %v240, %v303
        %vm628 = vcmp.eq.s32.totalorder %v240, %v307
        %vm629 = vcmp.eq.s32.totalorder %v240, %v311
        %vm630 = vcmp.eq.s32.totalorder %v240, %v315
        %vm631 = vcmp.eq.s32.totalorder %v240, %v319
        %vm632 = vcmp.eq.s32.totalorder %v240, %v323
        %vm633 = vcmp.eq.s32.totalorder %v240, %v327
        %vm634 = vcmp.eq.s32.totalorder %v241, %v259
        %vm635 = vcmp.eq.s32.totalorder %v241, %v263
        %vm636 = vcmp.eq.s32.totalorder %v241, %v267
        %vm637 = vcmp.eq.s32.totalorder %v241, %v271
        %vm638 = vcmp.eq.s32.totalorder %v241, %v275
        %vm639 = vcmp.eq.s32.totalorder %v241, %v279
        %vm640 = vcmp.eq.s32.totalorder %v241, %v283
        %vm641 = vcmp.eq.s32.totalorder %v241, %v287
        %vm642 = vcmp.eq.s32.totalorder %v241, %v291
        %vm643 = vcmp.eq.s32.totalorder %v241, %v295
        %vm644 = vcmp.eq.s32.totalorder %v241, %v299
        %vm645 = vcmp.eq.s32.totalorder %v241, %v303
        %vm646 = vcmp.eq.s32.totalorder %v241, %v307
        %vm647 = vcmp.eq.s32.totalorder %v241, %v311
        %vm648 = vcmp.eq.s32.totalorder %v241, %v315
        %vm649 = vcmp.eq.s32.totalorder %v241, %v319
        %vm650 = vcmp.eq.s32.totalorder %v241, %v323
        %vm651 = vcmp.eq.s32.totalorder %v241, %v327
        %vm652 = vcmp.eq.s32.totalorder %v242, %v259
        %vm653 = vcmp.eq.s32.totalorder %v242, %v263
        %vm654 = vcmp.eq.s32.totalorder %v242, %v267
        %vm655 = vcmp.eq.s32.totalorder %v242, %v271
        %vm656 = vcmp.eq.s32.totalorder %v242, %v275
        %vm657 = vcmp.eq.s32.totalorder %v242, %v279
        %vm658 = vcmp.eq.s32.totalorder %v242, %v283
        %vm659 = vcmp.eq.s32.totalorder %v242, %v287
        %vm660 = vcmp.eq.s32.totalorder %v242, %v291
        %vm661 = vcmp.eq.s32.totalorder %v242, %v295
        %vm662 = vcmp.eq.s32.totalorder %v242, %v299
        %vm663 = vcmp.eq.s32.totalorder %v242, %v303
        %vm664 = vcmp.eq.s32.totalorder %v242, %v307
        %vm665 = vcmp.eq.s32.totalorder %v242, %v311
        %vm666 = vcmp.eq.s32.totalorder %v242, %v315
        %vm667 = vcmp.eq.s32.totalorder %v242, %v319
        %vm668 = vcmp.eq.s32.totalorder %v242, %v323
        %vm669 = vcmp.eq.s32.totalorder %v242, %v327
        %vm670 = vcmp.eq.s32.totalorder %v243, %v259
        %vm671 = vcmp.eq.s32.totalorder %v243, %v263
        %vm672 = vcmp.eq.s32.totalorder %v243, %v267
        %vm673 = vcmp.eq.s32.totalorder %v243, %v271
        %vm674 = vcmp.eq.s32.totalorder %v243, %v275
        %vm675 = vcmp.eq.s32.totalorder %v243, %v279
        %vm676 = vcmp.eq.s32.totalorder %v243, %v283
        %vm677 = vcmp.eq.s32.totalorder %v243, %v287
        %vm678 = vcmp.eq.s32.totalorder %v243, %v291
        %vm679 = vcmp.eq.s32.totalorder %v243, %v295
        %vm680 = vcmp.eq.s32.totalorder %v243, %v299
        %vm681 = vcmp.eq.s32.totalorder %v243, %v303
        %vm682 = vcmp.eq.s32.totalorder %v243, %v307
        %vm683 = vcmp.eq.s32.totalorder %v243, %v311
        %vm684 = vcmp.eq.s32.totalorder %v243, %v315
        %vm685 = vcmp.eq.s32.totalorder %v243, %v319
        %vm686 = vcmp.eq.s32.totalorder %v243, %v323
        %vm687 = vcmp.eq.s32.totalorder %v243, %v327
        %vm688 = vcmp.eq.s32.totalorder %v244, %v259
        %vm689 = vcmp.eq.s32.totalorder %v244, %v263
        %vm690 = vcmp.eq.s32.totalorder %v244, %v267
        %vm691 = vcmp.eq.s32.totalorder %v244, %v271
        %vm692 = vcmp.eq.s32.totalorder %v244, %v275
        %vm693 = vcmp.eq.s32.totalorder %v244, %v279
        %vm694 = vcmp.eq.s32.totalorder %v244, %v283
        %vm695 = vcmp.eq.s32.totalorder %v244, %v287
        %vm696 = vcmp.eq.s32.totalorder %v244, %v291
        %vm697 = vcmp.eq.s32.totalorder %v244, %v295
        %vm698 = vcmp.eq.s32.totalorder %v244, %v299
        %vm699 = vcmp.eq.s32.totalorder %v244, %v303
        %vm700 = vcmp.eq.s32.totalorder %v244, %v307
        %vm701 = vcmp.eq.s32.totalorder %v244, %v311
        %vm702 = vcmp.eq.s32.totalorder %v244, %v315
        %vm703 = vcmp.eq.s32.totalorder %v244, %v319
        %vm704 = vcmp.eq.s32.totalorder %v244, %v323
        %vm705 = vcmp.eq.s32.totalorder %v244, %v327
        %vm706 = vcmp.eq.s32.totalorder %v245, %v259
        %vm707 = vcmp.eq.s32.totalorder %v245, %v263
        %vm708 = vcmp.eq.s32.totalorder %v245, %v267
        %vm709 = vcmp.eq.s32.totalorder %v245, %v271
        %vm710 = vcmp.eq.s32.totalorder %v245, %v275
        %vm711 = vcmp.eq.s32.totalorder %v245, %v279
        %vm712 = vcmp.eq.s32.totalorder %v245, %v283
        %vm713 = vcmp.eq.s32.totalorder %v245, %v287
        %vm714 = vcmp.eq.s32.totalorder %v245, %v291
        %vm715 = vcmp.eq.s32.totalorder %v245, %v295
        %vm716 = vcmp.eq.s32.totalorder %v245, %v299
        %vm717 = vcmp.eq.s32.totalorder %v245, %v303
        %vm718 = vcmp.eq.s32.totalorder %v245, %v307
        %vm719 = vcmp.eq.s32.totalorder %v245, %v311
        %vm720 = vcmp.eq.s32.totalorder %v245, %v315
        %vm721 = vcmp.eq.s32.totalorder %v245, %v319
        %vm722 = vcmp.eq.s32.totalorder %v245, %v323
        %vm723 = vcmp.eq.s32.totalorder %v245, %v327
        %vm724 = vcmp.eq.s32.totalorder %v246, %v259
        %vm725 = vcmp.eq.s32.totalorder %v246, %v263
        %vm726 = vcmp.eq.s32.totalorder %v246, %v267
        %vm727 = vcmp.eq.s32.totalorder %v246, %v271
        %vm728 = vcmp.eq.s32.totalorder %v246, %v275
        %vm729 = vcmp.eq.s32.totalorder %v246, %v279
        %vm730 = vcmp.eq.s32.totalorder %v246, %v283
        %vm731 = vcmp.eq.s32.totalorder %v246, %v287
        %vm732 = vcmp.eq.s32.totalorder %v246, %v291
        %vm733 = vcmp.eq.s32.totalorder %v246, %v295
        %vm734 = vcmp.eq.s32.totalorder %v246, %v299
        %vm735 = vcmp.eq.s32.totalorder %v246, %v303
        %vm736 = vcmp.eq.s32.totalorder %v246, %v307
        %vm737 = vcmp.eq.s32.totalorder %v246, %v311
        %vm738 = vcmp.eq.s32.totalorder %v246, %v315
        %vm739 = vcmp.eq.s32.totalorder %v246, %v319
        %vm740 = vcmp.eq.s32.totalorder %v246, %v323
        %vm741 = vcmp.eq.s32.totalorder %v246, %v327
        %vm742 = vcmp.eq.s32.totalorder %v247, %v259
        %vm743 = vcmp.eq.s32.totalorder %v247, %v263
        %vm744 = vcmp.eq.s32.totalorder %v247, %v267
        %vm745 = vcmp.eq.s32.totalorder %v247, %v271
        %vm746 = vcmp.eq.s32.totalorder %v247, %v275
        %vm747 = vcmp.eq.s32.totalorder %v247, %v279
        %vm748 = vcmp.eq.s32.totalorder %v247, %v283
        %vm749 = vcmp.eq.s32.totalorder %v247, %v287
        %vm750 = vcmp.eq.s32.totalorder %v247, %v291
        %vm751 = vcmp.eq.s32.totalorder %v247, %v295
        %vm752 = vcmp.eq.s32.totalorder %v247, %v299
        %vm753 = vcmp.eq.s32.totalorder %v247, %v303
        %vm754 = vcmp.eq.s32.totalorder %v247, %v307
        %vm755 = vcmp.eq.s32.totalorder %v247, %v311
        %vm756 = vcmp.eq.s32.totalorder %v247, %v315
        %vm757 = vcmp.eq.s32.totalorder %v247, %v319
        %vm758 = vcmp.eq.s32.totalorder %v247, %v323
        %vm759 = vcmp.eq.s32.totalorder %v247, %v327
        %vm760 = vcmp.eq.s32.totalorder %v248, %v259
        %vm761 = vcmp.eq.s32.totalorder %v248, %v263
        %vm762 = vcmp.eq.s32.totalorder %v248, %v267
        %vm763 = vcmp.eq.s32.totalorder %v248, %v271
        %vm764 = vcmp.eq.s32.totalorder %v248, %v275
        %vm765 = vcmp.eq.s32.totalorder %v248, %v279
        %vm766 = vcmp.eq.s32.totalorder %v248, %v283
        %vm767 = vcmp.eq.s32.totalorder %v248, %v287
        %vm768 = vcmp.eq.s32.totalorder %v248, %v291
        %vm769 = vcmp.eq.s32.totalorder %v248, %v295
        %vm770 = vcmp.eq.s32.totalorder %v248, %v299
        %vm771 = vcmp.eq.s32.totalorder %v248, %v303
        %vm772 = vcmp.eq.s32.totalorder %v248, %v307
        %vm773 = vcmp.eq.s32.totalorder %v248, %v311
        %vm774 = vcmp.eq.s32.totalorder %v248, %v315
        %vm775 = vcmp.eq.s32.totalorder %v248, %v319
        %vm776 = vcmp.eq.s32.totalorder %v248, %v323
        %vm777 = vcmp.eq.s32.totalorder %v248, %v327
        %vm778 = vcmp.eq.s32.totalorder %v249, %v259
        %vm779 = vcmp.eq.s32.totalorder %v249, %v263
        %vm780 = vcmp.eq.s32.totalorder %v249, %v267
        %vm781 = vcmp.eq.s32.totalorder %v249, %v271
        %vm782 = vcmp.eq.s32.totalorder %v249, %v275
        %vm783 = vcmp.eq.s32.totalorder %v249, %v279
        %vm784 = vcmp.eq.s32.totalorder %v249, %v283
        %vm785 = vcmp.eq.s32.totalorder %v249, %v287
        %vm786 = vcmp.eq.s32.totalorder %v249, %v291
        %vm787 = vcmp.eq.s32.totalorder %v249, %v295
        %vm788 = vcmp.eq.s32.totalorder %v249, %v299
        %vm789 = vcmp.eq.s32.totalorder %v249, %v303
        %vm790 = vcmp.eq.s32.totalorder %v249, %v307
        %vm791 = vcmp.eq.s32.totalorder %v249, %v311
        %vm792 = vcmp.eq.s32.totalorder %v249, %v315
        %vm793 = vcmp.eq.s32.totalorder %v249, %v319
        %vm794 = vcmp.eq.s32.totalorder %v249, %v323
        %vm795 = vcmp.eq.s32.totalorder %v249, %v327
        %vm796 = vcmp.eq.s32.totalorder %v250, %v259
        %vm797 = vcmp.eq.s32.totalorder %v250, %v263
        %vm798 = vcmp.eq.s32.totalorder %v250, %v267
        %vm799 = vcmp.eq.s32.totalorder %v250, %v271
        %vm800 = vcmp.eq.s32.totalorder %v250, %v275
        %vm801 = vcmp.eq.s32.totalorder %v250, %v279
        %vm802 = vcmp.eq.s32.totalorder %v250, %v283
        %vm803 = vcmp.eq.s32.totalorder %v250, %v287
        %vm804 = vcmp.eq.s32.totalorder %v250, %v291
        %vm805 = vcmp.eq.s32.totalorder %v250, %v295
        %vm806 = vcmp.eq.s32.totalorder %v250, %v299
        %vm807 = vcmp.eq.s32.totalorder %v250, %v303
        %vm808 = vcmp.eq.s32.totalorder %v250, %v307
        %vm809 = vcmp.eq.s32.totalorder %v250, %v311
        %vm810 = vcmp.eq.s32.totalorder %v250, %v315
        %vm811 = vcmp.eq.s32.totalorder %v250, %v319
        %vm812 = vcmp.eq.s32.totalorder %v250, %v323
        %vm813 = vcmp.eq.s32.totalorder %v250, %v327
        %vm814 = vcmp.eq.s32.totalorder %v251, %v259
        %vm815 = vcmp.eq.s32.totalorder %v251, %v263
        %vm816 = vcmp.eq.s32.totalorder %v251, %v267
        %vm817 = vcmp.eq.s32.totalorder %v251, %v271
        %vm818 = vcmp.eq.s32.totalorder %v251, %v275
        %vm819 = vcmp.eq.s32.totalorder %v251, %v279
        %vm820 = vcmp.eq.s32.totalorder %v251, %v283
        %vm821 = vcmp.eq.s32.totalorder %v251, %v287
        %vm822 = vcmp.eq.s32.totalorder %v251, %v291
        %vm823 = vcmp.eq.s32.totalorder %v251, %v295
        %vm824 = vcmp.eq.s32.totalorder %v251, %v299
        %vm825 = vcmp.eq.s32.totalorder %v251, %v303
        %vm826 = vcmp.eq.s32.totalorder %v251, %v307
        %vm827 = vcmp.eq.s32.totalorder %v251, %v311
        %vm828 = vcmp.eq.s32.totalorder %v251, %v315
        %vm829 = vcmp.eq.s32.totalorder %v251, %v319
        %vm830 = vcmp.eq.s32.totalorder %v251, %v323
        %vm831 = vcmp.eq.s32.totalorder %v251, %v327
        %vm832 = vcmp.eq.s32.totalorder %v252, %v259
        %vm833 = vcmp.eq.s32.totalorder %v252, %v263
        %vm834 = vcmp.eq.s32.totalorder %v252, %v267
        %vm835 = vcmp.eq.s32.totalorder %v252, %v271
        %vm836 = vcmp.eq.s32.totalorder %v252, %v275
        %vm837 = vcmp.eq.s32.totalorder %v252, %v279
        %vm838 = vcmp.eq.s32.totalorder %v252, %v283
        %vm839 = vcmp.eq.s32.totalorder %v252, %v287
        %vm840 = vcmp.eq.s32.totalorder %v252, %v291
        %vm841 = vcmp.eq.s32.totalorder %v252, %v295
        %vm842 = vcmp.eq.s32.totalorder %v252, %v299
        %vm843 = vcmp.eq.s32.totalorder %v252, %v303
        %vm844 = vcmp.eq.s32.totalorder %v252, %v307
        %vm845 = vcmp.eq.s32.totalorder %v252, %v311
        %vm846 = vcmp.eq.s32.totalorder %v252, %v315
        %vm847 = vcmp.eq.s32.totalorder %v252, %v319
        %vm848 = vcmp.eq.s32.totalorder %v252, %v323
        %vm849 = vcmp.eq.s32.totalorder %v252, %v327
        %vm850 = vcmp.eq.s32.totalorder %v253, %v259
        %vm851 = vcmp.eq.s32.totalorder %v253, %v263
        %vm852 = vcmp.eq.s32.totalorder %v253, %v267
        %vm853 = vcmp.eq.s32.totalorder %v253, %v271
        %vm854 = vcmp.eq.s32.totalorder %v253, %v275
        %vm855 = vcmp.eq.s32.totalorder %v253, %v279
        %vm856 = vcmp.eq.s32.totalorder %v253, %v283
        %vm857 = vcmp.eq.s32.totalorder %v253, %v287
        %vm858 = vcmp.eq.s32.totalorder %v253, %v291
        %vm859 = vcmp.eq.s32.totalorder %v253, %v295
        %vm860 = vcmp.eq.s32.totalorder %v253, %v299
        %vm861 = vcmp.eq.s32.totalorder %v253, %v303
        %vm862 = vcmp.eq.s32.totalorder %v253, %v307
        %vm863 = vcmp.eq.s32.totalorder %v253, %v311
        %vm864 = vcmp.eq.s32.totalorder %v253, %v315
        %vm865 = vcmp.eq.s32.totalorder %v253, %v319
        %vm866 = vcmp.eq.s32.totalorder %v253, %v323
        %vm867 = vcmp.eq.s32.totalorder %v253, %v327
        %vm868 = vcmp.eq.s32.totalorder %v254, %v259
        %vm869 = vcmp.eq.s32.totalorder %v254, %v263
        %vm870 = vcmp.eq.s32.totalorder %v254, %v267
        %vm871 = vcmp.eq.s32.totalorder %v254, %v271
        %vm872 = vcmp.eq.s32.totalorder %v254, %v275
        %vm873 = vcmp.eq.s32.totalorder %v254, %v279
        %vm874 = vcmp.eq.s32.totalorder %v254, %v283
        %vm875 = vcmp.eq.s32.totalorder %v254, %v287
        %vm876 = vcmp.eq.s32.totalorder %v254, %v291
        %vm877 = vcmp.eq.s32.totalorder %v254, %v295
        %vm878 = vcmp.eq.s32.totalorder %v254, %v299
        %vm879 = vcmp.eq.s32.totalorder %v254, %v303
        %vm880 = vcmp.eq.s32.totalorder %v254, %v307
        %vm881 = vcmp.eq.s32.totalorder %v254, %v311
        %vm882 = vcmp.eq.s32.totalorder %v254, %v315
        %vm883 = vcmp.eq.s32.totalorder %v254, %v319
        %vm884 = vcmp.eq.s32.totalorder %v254, %v323
        %vm885 = vcmp.eq.s32.totalorder %v254, %v327
        %vm886 = vcmp.eq.s32.totalorder %v255, %v259
        %vm887 = vcmp.eq.s32.totalorder %v255, %v263
        %vm888 = vcmp.eq.s32.totalorder %v255, %v267
        %vm889 = vcmp.eq.s32.totalorder %v255, %v271
        %vm890 = vcmp.eq.s32.totalorder %v255, %v275
        %vm891 = vcmp.eq.s32.totalorder %v255, %v279
        %vm892 = vcmp.eq.s32.totalorder %v255, %v283
        %vm893 = vcmp.eq.s32.totalorder %v255, %v287
        %vm894 = vcmp.eq.s32.totalorder %v255, %v291
        %vm895 = vcmp.eq.s32.totalorder %v255, %v295
        %vm896 = vcmp.eq.s32.totalorder %v255, %v299
        %vm897 = vcmp.eq.s32.totalorder %v255, %v303
        %vm898 = vcmp.eq.s32.totalorder %v255, %v307
        %vm899 = vcmp.eq.s32.totalorder %v255, %v311
        %vm900 = vcmp.eq.s32.totalorder %v255, %v315
        %vm901 = vcmp.eq.s32.totalorder %v255, %v319
        %vm902 = vcmp.eq.s32.totalorder %v255, %v323
        %vm903 = vcmp.eq.s32.totalorder %v255, %v327
        %v904 = vsel %vm328, 1, 0
        %v905 = vsel %vm329, 1, 0
        %v906 = vsel %vm330, 1, 0
        %v907 = vsel %vm331, 1, 0
        %v908 = vsel %vm332, 1, 0
        %v909 = vsel %vm333, 1, 0
        %v910 = vsel %vm334, 1, 0
        %v911 = vsel %vm335, 1, 0
        %v912 = vsel %vm336, 1, 0
        %v913 = vsel %vm337, 1, 0
        %v914 = vsel %vm338, 1, 0
        %v915 = vsel %vm339, 1, 0
        %v916 = vsel %vm340, 1, 0
        %v917 = vsel %vm341, 1, 0
        %v918 = vsel %vm342, 1, 0
        %v919 = vsel %vm343, 1, 0
        %v920 = vsel %vm344, 1, 0
        %v921 = vsel %vm345, 1, 0
        %v922 = vsel %vm346, 1, 0
        %v923 = vsel %vm347, 1, 0
        %v924 = vsel %vm348, 1, 0
        %v925 = vsel %vm349, 1, 0
        %v926 = vsel %vm350, 1, 0
        %v927 = vsel %vm351, 1, 0
        %v928 = vsel %vm352, 1, 0
        %v929 = vsel %vm353, 1, 0
        %v930 = vsel %vm354, 1, 0
        %v931 = vsel %vm355, 1, 0
        %v932 = vsel %vm356, 1, 0
        %v933 = vsel %vm357, 1, 0
        %v934 = vsel %vm358, 1, 0
        %v935 = vsel %vm359, 1, 0
        %v936 = vsel %vm360, 1, 0
        %v937 = vsel %vm361, 1, 0
        %v938 = vsel %vm362, 1, 0
        %v939 = vsel %vm363, 1, 0
        %v940 = vsel %vm364, 1, 0
        %v941 = vsel %vm365, 1, 0
        %v942 = vsel %vm366, 1, 0
        %v943 = vsel %vm367, 1, 0
        %v944 = vsel %vm368, 1, 0
        %v945 = vsel %vm369, 1, 0
        %v946 = vsel %vm370, 1, 0
        %v947 = vsel %vm371, 1, 0
        %v948 = vsel %vm372, 1, 0
        %v949 = vsel %vm373, 1, 0
        %v950 = vsel %vm374, 1, 0
        %v951 = vsel %vm375, 1, 0
        %v952 = vsel %vm376, 1, 0
        %v953 = vsel %vm377, 1, 0
        %v954 = vsel %vm378, 1, 0
        %v955 = vsel %vm379, 1, 0
        %v956 = vsel %vm380, 1, 0
        %v957 = vsel %vm381, 1, 0
        %v958 = vsel %vm382, 1, 0
        %v959 = vsel %vm383, 1, 0
        %v960 = vsel %vm384, 1, 0
        %v961 = vsel %vm385, 1, 0
        %v962 = vsel %vm386, 1, 0
        %v963 = vsel %vm387, 1, 0
        %v964 = vsel %vm388, 1, 0
        %v965 = vsel %vm389, 1, 0
        %v966 = vsel %vm390, 1, 0
        %v967 = vsel %vm391, 1, 0
        %v968 = vsel %vm392, 1, 0
        %v969 = vsel %vm393, 1, 0
        %v970 = vsel %vm394, 1, 0
        %v971 = vsel %vm395, 1, 0
        %v972 = vsel %vm396, 1, 0
        %v973 = vsel %vm397, 1, 0
        %v974 = vsel %vm398, 1, 0
        %v975 = vsel %vm399, 1, 0
        %v976 = vsel %vm400, 1, 0
        %v977 = vsel %vm401, 1, 0
        %v978 = vsel %vm402, 1, 0
        %v979 = vsel %vm403, 1, 0
        %v980 = vsel %vm404, 1, 0
        %v981 = vsel %vm405, 1, 0
        %v982 = vsel %vm406, 1, 0
        %v983 = vsel %vm407, 1, 0
        %v984 = vsel %vm408, 1, 0
        %v985 = vsel %vm409, 1, 0
        %v986 = vsel %vm410, 1, 0
        %v987 = vsel %vm411, 1, 0
        %v988 = vsel %vm412, 1, 0
        %v989 = vsel %vm413, 1, 0
        %v990 = vsel %vm414, 1, 0
        %v991 = vsel %vm415, 1, 0
        %v992 = vsel %vm416, 1, 0
        %v993 = vsel %vm417, 1, 0
        %v994 = vsel %vm418, 1, 0
        %v995 = vsel %vm419, 1, 0
        %v996 = vsel %vm420, 1, 0
        %v997 = vsel %vm421, 1, 0
        %v998 = vsel %vm422, 1, 0
        %v999 = vsel %vm423, 1, 0
        %v1000 = vsel %vm424, 1, 0
        %v1001 = vsel %vm425, 1, 0
        %v1002 = vsel %vm426, 1, 0
        %v1003 = vsel %vm427, 1, 0
        %v1004 = vsel %vm428, 1, 0
        %v1005 = vsel %vm429, 1, 0
        %v1006 = vsel %vm430, 1, 0
        %v1007 = vsel %vm431, 1, 0
        %v1008 = vsel %vm432, 1, 0
        %v1009 = vsel %vm433, 1, 0
        %v1010 = vsel %vm434, 1, 0
        %v1011 = vsel %vm435, 1, 0
        %v1012 = vsel %vm436, 1, 0
        %v1013 = vsel %vm437, 1, 0
        %v1014 = vsel %vm438, 1, 0
        %v1015 = vsel %vm439, 1, 0
        %v1016 = vsel %vm440, 1, 0
        %v1017 = vsel %vm441, 1, 0
        %v1018 = vsel %vm442, 1, 0
        %v1019 = vsel %vm443, 1, 0
        %v1020 = vsel %vm444, 1, 0
        %v1021 = vsel %vm445, 1, 0
        %v1022 = vsel %vm446, 1, 0
        %v1023 = vsel %vm447, 1, 0
        %v1024 = vsel %vm448, 1, 0
        %v1025 = vsel %vm449, 1, 0
        %v1026 = vsel %vm450, 1, 0
        %v1027 = vsel %vm451, 1, 0
        %v1028 = vsel %vm452, 1, 0
        %v1029 = vsel %vm453, 1, 0
        %v1030 = vsel %vm454, 1, 0
        %v1031 = vsel %vm455, 1, 0
        %v1032 = vsel %vm456, 1, 0
        %v1033 = vsel %vm457, 1, 0
        %v1034 = vsel %vm458, 1, 0
        %v1035 = vsel %vm459, 1, 0
        %v1036 = vsel %vm460, 1, 0
        %v1037 = vsel %vm461, 1, 0
        %v1038 = vsel %vm462, 1, 0
        %v1039 = vsel %vm463, 1, 0
        %v1040 = vsel %vm464, 1, 0
        %v1041 = vsel %vm465, 1, 0
        %v1042 = vsel %vm466, 1, 0
        %v1043 = vsel %vm467, 1, 0
        %v1044 = vsel %vm468, 1, 0
        %v1045 = vsel %vm469, 1, 0
        %v1046 = vsel %vm470, 1, 0
        %v1047 = vsel %vm471, 1, 0
        %v1048 = vsel %vm472, 1, 0
        %v1049 = vsel %vm473, 1, 0
        %v1050 = vsel %vm474, 1, 0
        %v1051 = vsel %vm475, 1, 0
        %v1052 = vsel %vm476, 1, 0
        %v1053 = vsel %vm477, 1, 0
        %v1054 = vsel %vm478, 1, 0
        %v1055 = vsel %vm479, 1, 0
        %v1056 = vsel %vm480, 1, 0
        %v1057 = vsel %vm481, 1, 0
        %v1058 = vsel %vm482, 1, 0
        %v1059 = vsel %vm483, 1, 0
        %v1060 = vsel %vm484, 1, 0
        %v1061 = vsel %vm485, 1, 0
        %v1062 = vsel %vm486, 1, 0
        %v1063 = vsel %vm487, 1, 0
        %v1064 = vsel %vm488, 1, 0
        %v1065 = vsel %vm489, 1, 0
        %v1066 = vsel %vm490, 1, 0
        %v1067 = vsel %vm491, 1, 0
        %v1068 = vsel %vm492, 1, 0
        %v1069 = vsel %vm493, 1, 0
        %v1070 = vsel %vm494, 1, 0
        %v1071 = vsel %vm495, 1, 0
        %v1072 = vsel %vm496, 1, 0
        %v1073 = vsel %vm497, 1, 0
        %v1074 = vsel %vm498, 1, 0
        %v1075 = vsel %vm499, 1, 0
        %v1076 = vsel %vm500, 1, 0
        %v1077 = vsel %vm501, 1, 0
        %v1078 = vsel %vm502, 1, 0
        %v1079 = vsel %vm503, 1, 0
        %v1080 = vsel %vm504, 1, 0
        %v1081 = vsel %vm505, 1, 0
        %v1082 = vsel %vm506, 1, 0
        %v1083 = vsel %vm507, 1, 0
        %v1084 = vsel %vm508, 1, 0
        %v1085 = vsel %vm509, 1, 0
        %v1086 = vsel %vm510, 1, 0
        %v1087 = vsel %vm511, 1, 0
        %v1088 = vsel %vm512, 1, 0
        %v1089 = vsel %vm513, 1, 0
        %v1090 = vsel %vm514, 1, 0
        %v1091 = vsel %vm515, 1, 0
        %v1092 = vsel %vm516, 1, 0
        %v1093 = vsel %vm517, 1, 0
        %v1094 = vsel %vm518, 1, 0
        %v1095 = vsel %vm519, 1, 0
        %v1096 = vsel %vm520, 1, 0
        %v1097 = vsel %vm521, 1, 0
        %v1098 = vsel %vm522, 1, 0
        %v1099 = vsel %vm523, 1, 0
        %v1100 = vsel %vm524, 1, 0
        %v1101 = vsel %vm525, 1, 0
        %v1102 = vsel %vm526, 1, 0
        %v1103 = vsel %vm527, 1, 0
        %v1104 = vsel %vm528, 1, 0
        %v1105 = vsel %vm529, 1, 0
        %v1106 = vsel %vm530, 1, 0
        %v1107 = vsel %vm531, 1, 0
        %v1108 = vsel %vm532, 1, 0
        %v1109 = vsel %vm533, 1, 0
        %v1110 = vsel %vm534, 1, 0
        %v1111 = vsel %vm535, 1, 0
        %v1112 = vsel %vm536, 1, 0
        %v1113 = vsel %vm537, 1, 0
        %v1114 = vsel %vm538, 1, 0
        %v1115 = vsel %vm539, 1, 0
        %v1116 = vsel %vm540, 1, 0
        %v1117 = vsel %vm541, 1, 0
        %v1118 = vsel %vm542, 1, 0
        %v1119 = vsel %vm543, 1, 0
        %v1120 = vsel %vm544, 1, 0
        %v1121 = vsel %vm545, 1, 0
        %v1122 = vsel %vm546, 1, 0
        %v1123 = vsel %vm547, 1, 0
        %v1124 = vsel %vm548, 1, 0
        %v1125 = vsel %vm549, 1, 0
        %v1126 = vsel %vm550, 1, 0
        %v1127 = vsel %vm551, 1, 0
        %v1128 = vsel %vm552, 1, 0
        %v1129 = vsel %vm553, 1, 0
        %v1130 = vsel %vm554, 1, 0
        %v1131 = vsel %vm555, 1, 0
        %v1132 = vsel %vm556, 1, 0
        %v1133 = vsel %vm557, 1, 0
        %v1134 = vsel %vm558, 1, 0
        %v1135 = vsel %vm559, 1, 0
        %v1136 = vsel %vm560, 1, 0
        %v1137 = vsel %vm561, 1, 0
        %v1138 = vsel %vm562, 1, 0
        %v1139 = vsel %vm563, 1, 0
        %v1140 = vsel %vm564, 1, 0
        %v1141 = vsel %vm565, 1, 0
        %v1142 = vsel %vm566, 1, 0
        %v1143 = vsel %vm567, 1, 0
        %v1144 = vsel %vm568, 1, 0
        %v1145 = vsel %vm569, 1, 0
        %v1146 = vsel %vm570, 1, 0
        %v1147 = vsel %vm571, 1, 0
        %v1148 = vsel %vm572, 1, 0
        %v1149 = vsel %vm573, 1, 0
        %v1150 = vsel %vm574, 1, 0
        %v1151 = vsel %vm575, 1, 0
        %v1152 = vsel %vm576, 1, 0
        %v1153 = vsel %vm577, 1, 0
        %v1154 = vsel %vm578, 1, 0
        %v1155 = vsel %vm579, 1, 0
        %v1156 = vsel %vm580, 1, 0
        %v1157 = vsel %vm581, 1, 0
        %v1158 = vsel %vm582, 1, 0
        %v1159 = vsel %vm583, 1, 0
        %v1160 = vsel %vm584, 1, 0
        %v1161 = vsel %vm585, 1, 0
        %v1162 = vsel %vm586, 1, 0
        %v1163 = vsel %vm587, 1, 0
        %v1164 = vsel %vm588, 1, 0
        %v1165 = vsel %vm589, 1, 0
        %v1166 = vsel %vm590, 1, 0
        %v1167 = vsel %vm591, 1, 0
        %v1168 = vsel %vm592, 1, 0
        %v1169 = vsel %vm593, 1, 0
        %v1170 = vsel %vm594, 1, 0
        %v1171 = vsel %vm595, 1, 0
        %v1172 = vsel %vm596, 1, 0
        %v1173 = vsel %vm597, 1, 0
        %v1174 = vsel %vm598, 1, 0
        %v1175 = vsel %vm599, 1, 0
        %v1176 = vsel %vm600, 1, 0
        %v1177 = vsel %vm601, 1, 0
        %v1178 = vsel %vm602, 1, 0
        %v1179 = vsel %vm603, 1, 0
        %v1180 = vsel %vm604, 1, 0
        %v1181 = vsel %vm605, 1, 0
        %v1182 = vsel %vm606, 1, 0
        %v1183 = vsel %vm607, 1, 0
        %v1184 = vsel %vm608, 1, 0
        %v1185 = vsel %vm609, 1, 0
        %v1186 = vsel %vm610, 1, 0
        %v1187 = vsel %vm611, 1, 0
        %v1188 = vsel %vm612, 1, 0
        %v1189 = vsel %vm613, 1, 0
        %v1190 = vsel %vm614, 1, 0
        %v1191 = vsel %vm615, 1, 0
        %v1192 = vsel %vm616, 1, 0
        %v1193 = vsel %vm617, 1, 0
        %v1194 = vsel %vm618, 1, 0
        %v1195 = vsel %vm619, 1, 0
        %v1196 = vsel %vm620, 1, 0
        %v1197 = vsel %vm621, 1, 0
        %v1198 = vsel %vm622, 1, 0
        %v1199 = vsel %vm623, 1, 0
        %v1200 = vsel %vm624, 1, 0
        %v1201 = vsel %vm625, 1, 0
        %v1202 = vsel %vm626, 1, 0
        %v1203 = vsel %vm627, 1, 0
        %v1204 = vsel %vm628, 1, 0
        %v1205 = vsel %vm629, 1, 0
        %v1206 = vsel %vm630, 1, 0
        %v1207 = vsel %vm631, 1, 0
        %v1208 = vsel %vm632, 1, 0
        %v1209 = vsel %vm633, 1, 0
        %v1210 = vsel %vm634, 1, 0
        %v1211 = vsel %vm635, 1, 0
        %v1212 = vsel %vm636, 1, 0
        %v1213 = vsel %vm637, 1, 0
        %v1214 = vsel %vm638, 1, 0
        %v1215 = vsel %vm639, 1, 0
        %v1216 = vsel %vm640, 1, 0
        %v1217 = vsel %vm641, 1, 0
        %v1218 = vsel %vm642, 1, 0
        %v1219 = vsel %vm643, 1, 0
        %v1220 = vsel %vm644, 1, 0
        %v1221 = vsel %vm645, 1, 0
        %v1222 = vsel %vm646, 1, 0
        %v1223 = vsel %vm647, 1, 0
        %v1224 = vsel %vm648, 1, 0
        %v1225 = vsel %vm649, 1, 0
        %v1226 = vsel %vm650, 1, 0
        %v1227 = vsel %vm651, 1, 0
        %v1228 = vsel %vm652, 1, 0
        %v1229 = vsel %vm653, 1, 0
        %v1230 = vsel %vm654, 1, 0
        %v1231 = vsel %vm655, 1, 0
        %v1232 = vsel %vm656, 1, 0
        %v1233 = vsel %vm657, 1, 0
        %v1234 = vsel %vm658, 1, 0
        %v1235 = vsel %vm659, 1, 0
        %v1236 = vsel %vm660, 1, 0
        %v1237 = vsel %vm661, 1, 0
        %v1238 = vsel %vm662, 1, 0
        %v1239 = vsel %vm663, 1, 0
        %v1240 = vsel %vm664, 1, 0
        %v1241 = vsel %vm665, 1, 0
        %v1242 = vsel %vm666, 1, 0
        %v1243 = vsel %vm667, 1, 0
        %v1244 = vsel %vm668, 1, 0
        %v1245 = vsel %vm669, 1, 0
        %v1246 = vsel %vm670, 1, 0
        %v1247 = vsel %vm671, 1, 0
        %v1248 = vsel %vm672, 1, 0
        %v1249 = vsel %vm673, 1, 0
        %v1250 = vsel %vm674, 1, 0
        %v1251 = vsel %vm675, 1, 0
        %v1252 = vsel %vm676, 1, 0
        %v1253 = vsel %vm677, 1, 0
        %v1254 = vsel %vm678, 1, 0
        %v1255 = vsel %vm679, 1, 0
        %v1256 = vsel %vm680, 1, 0
        %v1257 = vsel %vm681, 1, 0
        %v1258 = vsel %vm682, 1, 0
        %v1259 = vsel %vm683, 1, 0
        %v1260 = vsel %vm684, 1, 0
        %v1261 = vsel %vm685, 1, 0
        %v1262 = vsel %vm686, 1, 0
        %v1263 = vsel %vm687, 1, 0
        %v1264 = vsel %vm688, 1, 0
        %v1265 = vsel %vm689, 1, 0
        %v1266 = vsel %vm690, 1, 0
        %v1267 = vsel %vm691, 1, 0
        %v1268 = vsel %vm692, 1, 0
        %v1269 = vsel %vm693, 1, 0
        %v1270 = vsel %vm694, 1, 0
        %v1271 = vsel %vm695, 1, 0
        %v1272 = vsel %vm696, 1, 0
        %v1273 = vsel %vm697, 1, 0
        %v1274 = vsel %vm698, 1, 0
        %v1275 = vsel %vm699, 1, 0
        %v1276 = vsel %vm700, 1, 0
        %v1277 = vsel %vm701, 1, 0
        %v1278 = vsel %vm702, 1, 0
        %v1279 = vsel %vm703, 1, 0
        %v1280 = vsel %vm704, 1, 0
        %v1281 = vsel %vm705, 1, 0
        %v1282 = vsel %vm706, 1, 0
        %v1283 = vsel %vm707, 1, 0
        %v1284 = vsel %vm708, 1, 0
        %v1285 = vsel %vm709, 1, 0
        %v1286 = vsel %vm710, 1, 0
        %v1287 = vsel %vm711, 1, 0
        %v1288 = vsel %vm712, 1, 0
        %v1289 = vsel %vm713, 1, 0
        %v1290 = vsel %vm714, 1, 0
        %v1291 = vsel %vm715, 1, 0
        %v1292 = vsel %vm716, 1, 0
        %v1293 = vsel %vm717, 1, 0
        %v1294 = vsel %vm718, 1, 0
        %v1295 = vsel %vm719, 1, 0
        %v1296 = vsel %vm720, 1, 0
        %v1297 = vsel %vm721, 1, 0
        %v1298 = vsel %vm722, 1, 0
        %v1299 = vsel %vm723, 1, 0
        %v1300 = vsel %vm724, 1, 0
        %v1301 = vsel %vm725, 1, 0
        %v1302 = vsel %vm726, 1, 0
        %v1303 = vsel %vm727, 1, 0
        %v1304 = vsel %vm728, 1, 0
        %v1305 = vsel %vm729, 1, 0
        %v1306 = vsel %vm730, 1, 0
        %v1307 = vsel %vm731, 1, 0
        %v1308 = vsel %vm732, 1, 0
        %v1309 = vsel %vm733, 1, 0
        %v1310 = vsel %vm734, 1, 0
        %v1311 = vsel %vm735, 1, 0
        %v1312 = vsel %vm736, 1, 0
        %v1313 = vsel %vm737, 1, 0
        %v1314 = vsel %vm738, 1, 0
        %v1315 = vsel %vm739, 1, 0
        %v1316 = vsel %vm740, 1, 0
        %v1317 = vsel %vm741, 1, 0
        %v1318 = vsel %vm742, 1, 0
        %v1319 = vsel %vm743, 1, 0
        %v1320 = vsel %vm744, 1, 0
        %v1321 = vsel %vm745, 1, 0
        %v1322 = vsel %vm746, 1, 0
        %v1323 = vsel %vm747, 1, 0
        %v1324 = vsel %vm748, 1, 0
        %v1325 = vsel %vm749, 1, 0
        %v1326 = vsel %vm750, 1, 0
        %v1327 = vsel %vm751, 1, 0
        %v1328 = vsel %vm752, 1, 0
        %v1329 = vsel %vm753, 1, 0
        %v1330 = vsel %vm754, 1, 0
        %v1331 = vsel %vm755, 1, 0
        %v1332 = vsel %vm756, 1, 0
        %v1333 = vsel %vm757, 1, 0
        %v1334 = vsel %vm758, 1, 0
        %v1335 = vsel %vm759, 1, 0
        %v1336 = vsel %vm760, 1, 0
        %v1337 = vsel %vm761, 1, 0
        %v1338 = vsel %vm762, 1, 0
        %v1339 = vsel %vm763, 1, 0
        %v1340 = vsel %vm764, 1, 0
        %v1341 = vsel %vm765, 1, 0
        %v1342 = vsel %vm766, 1, 0
        %v1343 = vsel %vm767, 1, 0
        %v1344 = vsel %vm768, 1, 0
        %v1345 = vsel %vm769, 1, 0
        %v1346 = vsel %vm770, 1, 0
        %v1347 = vsel %vm771, 1, 0
        %v1348 = vsel %vm772, 1, 0
        %v1349 = vsel %vm773, 1, 0
        %v1350 = vsel %vm774, 1, 0
        %v1351 = vsel %vm775, 1, 0
        %v1352 = vsel %vm776, 1, 0
        %v1353 = vsel %vm777, 1, 0
        %v1354 = vsel %vm778, 1, 0
        %v1355 = vsel %vm779, 1, 0
        %v1356 = vsel %vm780, 1, 0
        %v1357 = vsel %vm781, 1, 0
        %v1358 = vsel %vm782, 1, 0
        %v1359 = vsel %vm783, 1, 0
        %v1360 = vsel %vm784, 1, 0
        %v1361 = vsel %vm785, 1, 0
        %v1362 = vsel %vm786, 1, 0
        %v1363 = vsel %vm787, 1, 0
        %v1364 = vsel %vm788, 1, 0
        %v1365 = vsel %vm789, 1, 0
        %v1366 = vsel %vm790, 1, 0
        %v1367 = vsel %vm791, 1, 0
        %v1368 = vsel %vm792, 1, 0
        %v1369 = vsel %vm793, 1, 0
        %v1370 = vsel %vm794, 1, 0
        %v1371 = vsel %vm795, 1, 0
        %v1372 = vsel %vm796, 1, 0
        %v1373 = vsel %vm797, 1, 0
        %v1374 = vsel %vm798, 1, 0
        %v1375 = vsel %vm799, 1, 0
        %v1376 = vsel %vm800, 1, 0
        %v1377 = vsel %vm801, 1, 0
        %v1378 = vsel %vm802, 1, 0
        %v1379 = vsel %vm803, 1, 0
        %v1380 = vsel %vm804, 1, 0
        %v1381 = vsel %vm805, 1, 0
        %v1382 = vsel %vm806, 1, 0
        %v1383 = vsel %vm807, 1, 0
        %v1384 = vsel %vm808, 1, 0
        %v1385 = vsel %vm809, 1, 0
        %v1386 = vsel %vm810, 1, 0
        %v1387 = vsel %vm811, 1, 0
        %v1388 = vsel %vm812, 1, 0
        %v1389 = vsel %vm813, 1, 0
        %v1390 = vsel %vm814, 1, 0
        %v1391 = vsel %vm815, 1, 0
        %v1392 = vsel %vm816, 1, 0
        %v1393 = vsel %vm817, 1, 0
        %v1394 = vsel %vm818, 1, 0
        %v1395 = vsel %vm819, 1, 0
        %v1396 = vsel %vm820, 1, 0
        %v1397 = vsel %vm821, 1, 0
        %v1398 = vsel %vm822, 1, 0
        %v1399 = vsel %vm823, 1, 0
        %v1400 = vsel %vm824, 1, 0
        %v1401 = vsel %vm825, 1, 0
        %v1402 = vsel %vm826, 1, 0
        %v1403 = vsel %vm827, 1, 0
        %v1404 = vsel %vm828, 1, 0
        %v1405 = vsel %vm829, 1, 0
        %v1406 = vsel %vm830, 1, 0
        %v1407 = vsel %vm831, 1, 0
        %v1408 = vsel %vm832, 1, 0
        %v1409 = vsel %vm833, 1, 0
        %v1410 = vsel %vm834, 1, 0
        %v1411 = vsel %vm835, 1, 0
        %v1412 = vsel %vm836, 1, 0
        %v1413 = vsel %vm837, 1, 0
        %v1414 = vsel %vm838, 1, 0
        %v1415 = vsel %vm839, 1, 0
        %v1416 = vsel %vm840, 1, 0
        %v1417 = vsel %vm841, 1, 0
        %v1418 = vsel %vm842, 1, 0
        %v1419 = vsel %vm843, 1, 0
        %v1420 = vsel %vm844, 1, 0
        %v1421 = vsel %vm845, 1, 0
        %v1422 = vsel %vm846, 1, 0
        %v1423 = vsel %vm847, 1, 0
        %v1424 = vsel %vm848, 1, 0
        %v1425 = vsel %vm849, 1, 0
        %v1426 = vsel %vm850, 1, 0
        %v1427 = vsel %vm851, 1, 0
        %v1428 = vsel %vm852, 1, 0
        %v1429 = vsel %vm853, 1, 0
        %v1430 = vsel %vm854, 1, 0
        %v1431 = vsel %vm855, 1, 0
        %v1432 = vsel %vm856, 1, 0
        %v1433 = vsel %vm857, 1, 0
        %v1434 = vsel %vm858, 1, 0
        %v1435 = vsel %vm859, 1, 0
        %v1436 = vsel %vm860, 1, 0
        %v1437 = vsel %vm861, 1, 0
        %v1438 = vsel %vm862, 1, 0
        %v1439 = vsel %vm863, 1, 0
        %v1440 = vsel %vm864, 1, 0
        %v1441 = vsel %vm865, 1, 0
        %v1442 = vsel %vm866, 1, 0
        %v1443 = vsel %vm867, 1, 0
        %v1444 = vsel %vm868, 1, 0
        %v1445 = vsel %vm869, 1, 0
        %v1446 = vsel %vm870, 1, 0
        %v1447 = vsel %vm871, 1, 0
        %v1448 = vsel %vm872, 1, 0
        %v1449 = vsel %vm873, 1, 0
        %v1450 = vsel %vm874, 1, 0
        %v1451 = vsel %vm875, 1, 0
        %v1452 = vsel %vm876, 1, 0
        %v1453 = vsel %vm877, 1, 0
        %v1454 = vsel %vm878, 1, 0
        %v1455 = vsel %vm879, 1, 0
        %v1456 = vsel %vm880, 1, 0
        %v1457 = vsel %vm881, 1, 0
        %v1458 = vsel %vm882, 1, 0
        %v1459 = vsel %vm883, 1, 0
        %v1460 = vsel %vm884, 1, 0
        %v1461 = vsel %vm885, 1, 0
        %v1462 = vsel %vm886, 1, 0
        %v1463 = vsel %vm887, 1, 0
        %v1464 = vsel %vm888, 1, 0
        %v1465 = vsel %vm889, 1, 0
        %v1466 = vsel %vm890, 1, 0
        %v1467 = vsel %vm891, 1, 0
        %v1468 = vsel %vm892, 1, 0
        %v1469 = vsel %vm893, 1, 0
        %v1470 = vsel %vm894, 1, 0
        %v1471 = vsel %vm895, 1, 0
        %v1472 = vsel %vm896, 1, 0
        %v1473 = vsel %vm897, 1, 0
        %v1474 = vsel %vm898, 1, 0
        %v1475 = vsel %vm899, 1, 0
        %v1476 = vsel %vm900, 1, 0
        %v1477 = vsel %vm901, 1, 0
        %v1478 = vsel %vm902, 1, 0
        %v1479 = vsel %vm903, 1, 0
        %v1480 = vcvt.s32.f32 %v904
        %v1481 = vcvt.s32.f32 %v905
        %v1482 = vcvt.s32.f32 %v906
        %v1483 = vcvt.s32.f32 %v907
        %v1484 = vcvt.s32.f32 %v908
        %v1485 = vcvt.s32.f32 %v909
        %v1486 = vcvt.s32.f32 %v910
        %v1487 = vcvt.s32.f32 %v911
        %v1488 = vcvt.s32.f32 %v912
        %v1489 = vcvt.s32.f32 %v913
        %v1490 = vcvt.s32.f32 %v914
        %v1491 = vcvt.s32.f32 %v915
        %v1492 = vcvt.s32.f32 %v916
        %v1493 = vcvt.s32.f32 %v917
        %v1494 = vcvt.s32.f32 %v918
        %v1495 = vcvt.s32.f32 %v919
        %v1496 = vcvt.s32.f32 %v920
        %v1497 = vcvt.s32.f32 %v921
        %v1498 = vcvt.s32.f32 %v922
        %v1499 = vcvt.s32.f32 %v923
        %v1500 = vcvt.s32.f32 %v924
        %v1501 = vcvt.s32.f32 %v925
        %v1502 = vcvt.s32.f32 %v926
        %v1503 = vcvt.s32.f32 %v927
        %v1504 = vcvt.s32.f32 %v928
        %v1505 = vcvt.s32.f32 %v929
        %v1506 = vcvt.s32.f32 %v930
        %v1507 = vcvt.s32.f32 %v931
        %v1508 = vcvt.s32.f32 %v932
        %v1509 = vcvt.s32.f32 %v933
        %v1510 = vcvt.s32.f32 %v934
        %v1511 = vcvt.s32.f32 %v935
        %v1512 = vcvt.s32.f32 %v936
        %v1513 = vcvt.s32.f32 %v937
        %v1514 = vcvt.s32.f32 %v938
        %v1515 = vcvt.s32.f32 %v939
        %v1516 = vcvt.s32.f32 %v940
        %v1517 = vcvt.s32.f32 %v941
        %v1518 = vcvt.s32.f32 %v942
        %v1519 = vcvt.s32.f32 %v943
        %v1520 = vcvt.s32.f32 %v944
        %v1521 = vcvt.s32.f32 %v945
        %v1522 = vcvt.s32.f32 %v946
        %v1523 = vcvt.s32.f32 %v947
        %v1524 = vcvt.s32.f32 %v948
        %v1525 = vcvt.s32.f32 %v949
        %v1526 = vcvt.s32.f32 %v950
        %v1527 = vcvt.s32.f32 %v951
        %v1528 = vcvt.s32.f32 %v952
        %v1529 = vcvt.s32.f32 %v953
        %v1530 = vcvt.s32.f32 %v954
        %v1531 = vcvt.s32.f32 %v955
        %v1532 = vcvt.s32.f32 %v956
        %v1533 = vcvt.s32.f32 %v957
        %v1534 = vcvt.s32.f32 %v958
        %v1535 = vcvt.s32.f32 %v959
        %v1536 = vcvt.s32.f32 %v960
        %v1537 = vcvt.s32.f32 %v961
        %v1538 = vcvt.s32.f32 %v962
        %v1539 = vcvt.s32.f32 %v963
        %v1540 = vcvt.s32.f32 %v964
        %v1541 = vcvt.s32.f32 %v965
        %v1542 = vcvt.s32.f32 %v966
        %v1543 = vcvt.s32.f32 %v967
        %v1544 = vcvt.s32.f32 %v968
        %v1545 = vcvt.s32.f32 %v969
        %v1546 = vcvt.s32.f32 %v970
        %v1547 = vcvt.s32.f32 %v971
        %v1548 = vcvt.s32.f32 %v972
        %v1549 = vcvt.s32.f32 %v973
        %v1550 = vcvt.s32.f32 %v974
        %v1551 = vcvt.s32.f32 %v975
        %v1552 = vcvt.s32.f32 %v976
        %v1553 = vcvt.s32.f32 %v977
        %v1554 = vcvt.s32.f32 %v978
        %v1555 = vcvt.s32.f32 %v979
        %v1556 = vcvt.s32.f32 %v980
        %v1557 = vcvt.s32.f32 %v981
        %v1558 = vcvt.s32.f32 %v982
        %v1559 = vcvt.s32.f32 %v983
        %v1560 = vcvt.s32.f32 %v984
        %v1561 = vcvt.s32.f32 %v985
        %v1562 = vcvt.s32.f32 %v986
        %v1563 = vcvt.s32.f32 %v987
        %v1564 = vcvt.s32.f32 %v988
        %v1565 = vcvt.s32.f32 %v989
        %v1566 = vcvt.s32.f32 %v990
        %v1567 = vcvt.s32.f32 %v991
        %v1568 = vcvt.s32.f32 %v992
        %v1569 = vcvt.s32.f32 %v993
        %v1570 = vcvt.s32.f32 %v994
        %v1571 = vcvt.s32.f32 %v995
        %v1572 = vcvt.s32.f32 %v996
        %v1573 = vcvt.s32.f32 %v997
        %v1574 = vcvt.s32.f32 %v998
        %v1575 = vcvt.s32.f32 %v999
        %v1576 = vcvt.s32.f32 %v1000
        %v1577 = vcvt.s32.f32 %v1001
        %v1578 = vcvt.s32.f32 %v1002
        %v1579 = vcvt.s32.f32 %v1003
        %v1580 = vcvt.s32.f32 %v1004
        %v1581 = vcvt.s32.f32 %v1005
        %v1582 = vcvt.s32.f32 %v1006
        %v1583 = vcvt.s32.f32 %v1007
        %v1584 = vcvt.s32.f32 %v1008
        %v1585 = vcvt.s32.f32 %v1009
        %v1586 = vcvt.s32.f32 %v1010
        %v1587 = vcvt.s32.f32 %v1011
        %v1588 = vcvt.s32.f32 %v1012
        %v1589 = vcvt.s32.f32 %v1013
        %v1590 = vcvt.s32.f32 %v1014
        %v1591 = vcvt.s32.f32 %v1015
        %v1592 = vcvt.s32.f32 %v1016
        %v1593 = vcvt.s32.f32 %v1017
        %v1594 = vcvt.s32.f32 %v1018
        %v1595 = vcvt.s32.f32 %v1019
        %v1596 = vcvt.s32.f32 %v1020
        %v1597 = vcvt.s32.f32 %v1021
        %v1598 = vcvt.s32.f32 %v1022
        %v1599 = vcvt.s32.f32 %v1023
        %v1600 = vcvt.s32.f32 %v1024
        %v1601 = vcvt.s32.f32 %v1025
        %v1602 = vcvt.s32.f32 %v1026
        %v1603 = vcvt.s32.f32 %v1027
        %v1604 = vcvt.s32.f32 %v1028
        %v1605 = vcvt.s32.f32 %v1029
        %v1606 = vcvt.s32.f32 %v1030
        %v1607 = vcvt.s32.f32 %v1031
        %v1608 = vcvt.s32.f32 %v1032
        %v1609 = vcvt.s32.f32 %v1033
        %v1610 = vcvt.s32.f32 %v1034
        %v1611 = vcvt.s32.f32 %v1035
        %v1612 = vcvt.s32.f32 %v1036
        %v1613 = vcvt.s32.f32 %v1037
        %v1614 = vcvt.s32.f32 %v1038
        %v1615 = vcvt.s32.f32 %v1039
        %v1616 = vcvt.s32.f32 %v1040
        %v1617 = vcvt.s32.f32 %v1041
        %v1618 = vcvt.s32.f32 %v1042
        %v1619 = vcvt.s32.f32 %v1043
        %v1620 = vcvt.s32.f32 %v1044
        %v1621 = vcvt.s32.f32 %v1045
        %v1622 = vcvt.s32.f32 %v1046
        %v1623 = vcvt.s32.f32 %v1047
        %v1624 = vcvt.s32.f32 %v1048
        %v1625 = vcvt.s32.f32 %v1049
        %v1626 = vcvt.s32.f32 %v1050
        %v1627 = vcvt.s32.f32 %v1051
        %v1628 = vcvt.s32.f32 %v1052
        %v1629 = vcvt.s32.f32 %v1053
        %v1630 = vcvt.s32.f32 %v1054
        %v1631 = vcvt.s32.f32 %v1055
        %v1632 = vcvt.s32.f32 %v1056
        %v1633 = vcvt.s32.f32 %v1057
        %v1634 = vcvt.s32.f32 %v1058
        %v1635 = vcvt.s32.f32 %v1059
        %v1636 = vcvt.s32.f32 %v1060
        %v1637 = vcvt.s32.f32 %v1061
        %v1638 = vcvt.s32.f32 %v1062
        %v1639 = vcvt.s32.f32 %v1063
        %v1640 = vcvt.s32.f32 %v1064
        %v1641 = vcvt.s32.f32 %v1065
        %v1642 = vcvt.s32.f32 %v1066
        %v1643 = vcvt.s32.f32 %v1067
        %v1644 = vcvt.s32.f32 %v1068
        %v1645 = vcvt.s32.f32 %v1069
        %v1646 = vcvt.s32.f32 %v1070
        %v1647 = vcvt.s32.f32 %v1071
        %v1648 = vcvt.s32.f32 %v1072
        %v1649 = vcvt.s32.f32 %v1073
        %v1650 = vcvt.s32.f32 %v1074
        %v1651 = vcvt.s32.f32 %v1075
        %v1652 = vcvt.s32.f32 %v1076
        %v1653 = vcvt.s32.f32 %v1077
        %v1654 = vcvt.s32.f32 %v1078
        %v1655 = vcvt.s32.f32 %v1079
        %v1656 = vcvt.s32.f32 %v1080
        %v1657 = vcvt.s32.f32 %v1081
        %v1658 = vcvt.s32.f32 %v1082
        %v1659 = vcvt.s32.f32 %v1083
        %v1660 = vcvt.s32.f32 %v1084
        %v1661 = vcvt.s32.f32 %v1085
        %v1662 = vcvt.s32.f32 %v1086
        %v1663 = vcvt.s32.f32 %v1087
        %v1664 = vcvt.s32.f32 %v1088
        %v1665 = vcvt.s32.f32 %v1089
        %v1666 = vcvt.s32.f32 %v1090
        %v1667 = vcvt.s32.f32 %v1091
        %v1668 = vcvt.s32.f32 %v1092
        %v1669 = vcvt.s32.f32 %v1093
        %v1670 = vcvt.s32.f32 %v1094
        %v1671 = vcvt.s32.f32 %v1095
        %v1672 = vcvt.s32.f32 %v1096
        %v1673 = vcvt.s32.f32 %v1097
        %v1674 = vcvt.s32.f32 %v1098
        %v1675 = vcvt.s32.f32 %v1099
        %v1676 = vcvt.s32.f32 %v1100
        %v1677 = vcvt.s32.f32 %v1101
        %v1678 = vcvt.s32.f32 %v1102
        %v1679 = vcvt.s32.f32 %v1103
        %v1680 = vcvt.s32.f32 %v1104
        %v1681 = vcvt.s32.f32 %v1105
        %v1682 = vcvt.s32.f32 %v1106
        %v1683 = vcvt.s32.f32 %v1107
        %v1684 = vcvt.s32.f32 %v1108
        %v1685 = vcvt.s32.f32 %v1109
        %v1686 = vcvt.s32.f32 %v1110
        %v1687 = vcvt.s32.f32 %v1111
        %v1688 = vcvt.s32.f32 %v1112
        %v1689 = vcvt.s32.f32 %v1113
        %v1690 = vcvt.s32.f32 %v1114
        %v1691 = vcvt.s32.f32 %v1115
        %v1692 = vcvt.s32.f32 %v1116
        %v1693 = vcvt.s32.f32 %v1117
        %v1694 = vcvt.s32.f32 %v1118
        %v1695 = vcvt.s32.f32 %v1119
        %v1696 = vcvt.s32.f32 %v1120
        %v1697 = vcvt.s32.f32 %v1121
        %v1698 = vcvt.s32.f32 %v1122
        %v1699 = vcvt.s32.f32 %v1123
        %v1700 = vcvt.s32.f32 %v1124
        %v1701 = vcvt.s32.f32 %v1125
        %v1702 = vcvt.s32.f32 %v1126
        %v1703 = vcvt.s32.f32 %v1127
        %v1704 = vcvt.s32.f32 %v1128
        %v1705 = vcvt.s32.f32 %v1129
        %v1706 = vcvt.s32.f32 %v1130
        %v1707 = vcvt.s32.f32 %v1131
        %v1708 = vcvt.s32.f32 %v1132
        %v1709 = vcvt.s32.f32 %v1133
        %v1710 = vcvt.s32.f32 %v1134
        %v1711 = vcvt.s32.f32 %v1135
        %v1712 = vcvt.s32.f32 %v1136
        %v1713 = vcvt.s32.f32 %v1137
        %v1714 = vcvt.s32.f32 %v1138
        %v1715 = vcvt.s32.f32 %v1139
        %v1716 = vcvt.s32.f32 %v1140
        %v1717 = vcvt.s32.f32 %v1141
        %v1718 = vcvt.s32.f32 %v1142
        %v1719 = vcvt.s32.f32 %v1143
        %v1720 = vcvt.s32.f32 %v1144
        %v1721 = vcvt.s32.f32 %v1145
        %v1722 = vcvt.s32.f32 %v1146
        %v1723 = vcvt.s32.f32 %v1147
        %v1724 = vcvt.s32.f32 %v1148
        %v1725 = vcvt.s32.f32 %v1149
        %v1726 = vcvt.s32.f32 %v1150
        %v1727 = vcvt.s32.f32 %v1151
        %v1728 = vcvt.s32.f32 %v1152
        %v1729 = vcvt.s32.f32 %v1153
        %v1730 = vcvt.s32.f32 %v1154
        %v1731 = vcvt.s32.f32 %v1155
        %v1732 = vcvt.s32.f32 %v1156
        %v1733 = vcvt.s32.f32 %v1157
        %v1734 = vcvt.s32.f32 %v1158
        %v1735 = vcvt.s32.f32 %v1159
        %v1736 = vcvt.s32.f32 %v1160
        %v1737 = vcvt.s32.f32 %v1161
        %v1738 = vcvt.s32.f32 %v1162
        %v1739 = vcvt.s32.f32 %v1163
        %v1740 = vcvt.s32.f32 %v1164
        %v1741 = vcvt.s32.f32 %v1165
        %v1742 = vcvt.s32.f32 %v1166
        %v1743 = vcvt.s32.f32 %v1167
        %v1744 = vcvt.s32.f32 %v1168
        %v1745 = vcvt.s32.f32 %v1169
        %v1746 = vcvt.s32.f32 %v1170
        %v1747 = vcvt.s32.f32 %v1171
        %v1748 = vcvt.s32.f32 %v1172
        %v1749 = vcvt.s32.f32 %v1173
        %v1750 = vcvt.s32.f32 %v1174
        %v1751 = vcvt.s32.f32 %v1175
        %v1752 = vcvt.s32.f32 %v1176
        %v1753 = vcvt.s32.f32 %v1177
        %v1754 = vcvt.s32.f32 %v1178
        %v1755 = vcvt.s32.f32 %v1179
        %v1756 = vcvt.s32.f32 %v1180
        %v1757 = vcvt.s32.f32 %v1181
        %v1758 = vcvt.s32.f32 %v1182
        %v1759 = vcvt.s32.f32 %v1183
        %v1760 = vcvt.s32.f32 %v1184
        %v1761 = vcvt.s32.f32 %v1185
        %v1762 = vcvt.s32.f32 %v1186
        %v1763 = vcvt.s32.f32 %v1187
        %v1764 = vcvt.s32.f32 %v1188
        %v1765 = vcvt.s32.f32 %v1189
        %v1766 = vcvt.s32.f32 %v1190
        %v1767 = vcvt.s32.f32 %v1191
        %v1768 = vcvt.s32.f32 %v1192
        %v1769 = vcvt.s32.f32 %v1193
        %v1770 = vcvt.s32.f32 %v1194
        %v1771 = vcvt.s32.f32 %v1195
        %v1772 = vcvt.s32.f32 %v1196
        %v1773 = vcvt.s32.f32 %v1197
        %v1774 = vcvt.s32.f32 %v1198
        %v1775 = vcvt.s32.f32 %v1199
        %v1776 = vcvt.s32.f32 %v1200
        %v1777 = vcvt.s32.f32 %v1201
        %v1778 = vcvt.s32.f32 %v1202
        %v1779 = vcvt.s32.f32 %v1203
        %v1780 = vcvt.s32.f32 %v1204
        %v1781 = vcvt.s32.f32 %v1205
        %v1782 = vcvt.s32.f32 %v1206
        %v1783 = vcvt.s32.f32 %v1207
        %v1784 = vcvt.s32.f32 %v1208
        %v1785 = vcvt.s32.f32 %v1209
        %v1786 = vcvt.s32.f32 %v1210
        %v1787 = vcvt.s32.f32 %v1211
        %v1788 = vcvt.s32.f32 %v1212
        %v1789 = vcvt.s32.f32 %v1213
        %v1790 = vcvt.s32.f32 %v1214
        %v1791 = vcvt.s32.f32 %v1215
        %v1792 = vcvt.s32.f32 %v1216
        %v1793 = vcvt.s32.f32 %v1217
        %v1794 = vcvt.s32.f32 %v1218
        %v1795 = vcvt.s32.f32 %v1219
        %v1796 = vcvt.s32.f32 %v1220
        %v1797 = vcvt.s32.f32 %v1221
        %v1798 = vcvt.s32.f32 %v1222
        %v1799 = vcvt.s32.f32 %v1223
        %v1800 = vcvt.s32.f32 %v1224
        %v1801 = vcvt.s32.f32 %v1225
        %v1802 = vcvt.s32.f32 %v1226
        %v1803 = vcvt.s32.f32 %v1227
        %v1804 = vcvt.s32.f32 %v1228
        %v1805 = vcvt.s32.f32 %v1229
        %v1806 = vcvt.s32.f32 %v1230
        %v1807 = vcvt.s32.f32 %v1231
        %v1808 = vcvt.s32.f32 %v1232
        %v1809 = vcvt.s32.f32 %v1233
        %v1810 = vcvt.s32.f32 %v1234
        %v1811 = vcvt.s32.f32 %v1235
        %v1812 = vcvt.s32.f32 %v1236
        %v1813 = vcvt.s32.f32 %v1237
        %v1814 = vcvt.s32.f32 %v1238
        %v1815 = vcvt.s32.f32 %v1239
        %v1816 = vcvt.s32.f32 %v1240
        %v1817 = vcvt.s32.f32 %v1241
        %v1818 = vcvt.s32.f32 %v1242
        %v1819 = vcvt.s32.f32 %v1243
        %v1820 = vcvt.s32.f32 %v1244
        %v1821 = vcvt.s32.f32 %v1245
        %v1822 = vcvt.s32.f32 %v1246
        %v1823 = vcvt.s32.f32 %v1247
        %v1824 = vcvt.s32.f32 %v1248
        %v1825 = vcvt.s32.f32 %v1249
        %v1826 = vcvt.s32.f32 %v1250
        %v1827 = vcvt.s32.f32 %v1251
        %v1828 = vcvt.s32.f32 %v1252
        %v1829 = vcvt.s32.f32 %v1253
        %v1830 = vcvt.s32.f32 %v1254
        %v1831 = vcvt.s32.f32 %v1255
        %v1832 = vcvt.s32.f32 %v1256
        %v1833 = vcvt.s32.f32 %v1257
        %v1834 = vcvt.s32.f32 %v1258
        %v1835 = vcvt.s32.f32 %v1259
        %v1836 = vcvt.s32.f32 %v1260
        %v1837 = vcvt.s32.f32 %v1261
        %v1838 = vcvt.s32.f32 %v1262
        %v1839 = vcvt.s32.f32 %v1263
        %v1840 = vcvt.s32.f32 %v1264
        %v1841 = vcvt.s32.f32 %v1265
        %v1842 = vcvt.s32.f32 %v1266
        %v1843 = vcvt.s32.f32 %v1267
        %v1844 = vcvt.s32.f32 %v1268
        %v1845 = vcvt.s32.f32 %v1269
        %v1846 = vcvt.s32.f32 %v1270
        %v1847 = vcvt.s32.f32 %v1271
        %v1848 = vcvt.s32.f32 %v1272
        %v1849 = vcvt.s32.f32 %v1273
        %v1850 = vcvt.s32.f32 %v1274
        %v1851 = vcvt.s32.f32 %v1275
        %v1852 = vcvt.s32.f32 %v1276
        %v1853 = vcvt.s32.f32 %v1277
        %v1854 = vcvt.s32.f32 %v1278
        %v1855 = vcvt.s32.f32 %v1279
        %v1856 = vcvt.s32.f32 %v1280
        %v1857 = vcvt.s32.f32 %v1281
        %v1858 = vcvt.s32.f32 %v1282
        %v1859 = vcvt.s32.f32 %v1283
        %v1860 = vcvt.s32.f32 %v1284
        %v1861 = vcvt.s32.f32 %v1285
        %v1862 = vcvt.s32.f32 %v1286
        %v1863 = vcvt.s32.f32 %v1287
        %v1864 = vcvt.s32.f32 %v1288
        %v1865 = vcvt.s32.f32 %v1289
        %v1866 = vcvt.s32.f32 %v1290
        %v1867 = vcvt.s32.f32 %v1291
        %v1868 = vcvt.s32.f32 %v1292
        %v1869 = vcvt.s32.f32 %v1293
        %v1870 = vcvt.s32.f32 %v1294
        %v1871 = vcvt.s32.f32 %v1295
        %v1872 = vcvt.s32.f32 %v1296
        %v1873 = vcvt.s32.f32 %v1297
        %v1874 = vcvt.s32.f32 %v1298
        %v1875 = vcvt.s32.f32 %v1299
        %v1876 = vcvt.s32.f32 %v1300
        %v1877 = vcvt.s32.f32 %v1301
        %v1878 = vcvt.s32.f32 %v1302
        %v1879 = vcvt.s32.f32 %v1303
        %v1880 = vcvt.s32.f32 %v1304
        %v1881 = vcvt.s32.f32 %v1305
        %v1882 = vcvt.s32.f32 %v1306
        %v1883 = vcvt.s32.f32 %v1307
        %v1884 = vcvt.s32.f32 %v1308
        %v1885 = vcvt.s32.f32 %v1309
        %v1886 = vcvt.s32.f32 %v1310
        %v1887 = vcvt.s32.f32 %v1311
        %v1888 = vcvt.s32.f32 %v1312
        %v1889 = vcvt.s32.f32 %v1313
        %v1890 = vcvt.s32.f32 %v1314
        %v1891 = vcvt.s32.f32 %v1315
        %v1892 = vcvt.s32.f32 %v1316
        %v1893 = vcvt.s32.f32 %v1317
        %v1894 = vcvt.s32.f32 %v1318
        %v1895 = vcvt.s32.f32 %v1319
        %v1896 = vcvt.s32.f32 %v1320
        %v1897 = vcvt.s32.f32 %v1321
        %v1898 = vcvt.s32.f32 %v1322
        %v1899 = vcvt.s32.f32 %v1323
        %v1900 = vcvt.s32.f32 %v1324
        %v1901 = vcvt.s32.f32 %v1325
        %v1902 = vcvt.s32.f32 %v1326
        %v1903 = vcvt.s32.f32 %v1327
        %v1904 = vcvt.s32.f32 %v1328
        %v1905 = vcvt.s32.f32 %v1329
        %v1906 = vcvt.s32.f32 %v1330
        %v1907 = vcvt.s32.f32 %v1331
        %v1908 = vcvt.s32.f32 %v1332
        %v1909 = vcvt.s32.f32 %v1333
        %v1910 = vcvt.s32.f32 %v1334
        %v1911 = vcvt.s32.f32 %v1335
        %v1912 = vcvt.s32.f32 %v1336
        %v1913 = vcvt.s32.f32 %v1337
        %v1914 = vcvt.s32.f32 %v1338
        %v1915 = vcvt.s32.f32 %v1339
        %v1916 = vcvt.s32.f32 %v1340
        %v1917 = vcvt.s32.f32 %v1341
        %v1918 = vcvt.s32.f32 %v1342
        %v1919 = vcvt.s32.f32 %v1343
        %v1920 = vcvt.s32.f32 %v1344
        %v1921 = vcvt.s32.f32 %v1345
        %v1922 = vcvt.s32.f32 %v1346
        %v1923 = vcvt.s32.f32 %v1347
        %v1924 = vcvt.s32.f32 %v1348
        %v1925 = vcvt.s32.f32 %v1349
        %v1926 = vcvt.s32.f32 %v1350
        %v1927 = vcvt.s32.f32 %v1351
        %v1928 = vcvt.s32.f32 %v1352
        %v1929 = vcvt.s32.f32 %v1353
        %v1930 = vcvt.s32.f32 %v1354
        %v1931 = vcvt.s32.f32 %v1355
        %v1932 = vcvt.s32.f32 %v1356
        %v1933 = vcvt.s32.f32 %v1357
        %v1934 = vcvt.s32.f32 %v1358
        %v1935 = vcvt.s32.f32 %v1359
        %v1936 = vcvt.s32.f32 %v1360
        %v1937 = vcvt.s32.f32 %v1361
        %v1938 = vcvt.s32.f32 %v1362
        %v1939 = vcvt.s32.f32 %v1363
        %v1940 = vcvt.s32.f32 %v1364
        %v1941 = vcvt.s32.f32 %v1365
        %v1942 = vcvt.s32.f32 %v1366
        %v1943 = vcvt.s32.f32 %v1367
        %v1944 = vcvt.s32.f32 %v1368
        %v1945 = vcvt.s32.f32 %v1369
        %v1946 = vcvt.s32.f32 %v1370
        %v1947 = vcvt.s32.f32 %v1371
        %v1948 = vcvt.s32.f32 %v1372
        %v1949 = vcvt.s32.f32 %v1373
        %v1950 = vcvt.s32.f32 %v1374
        %v1951 = vcvt.s32.f32 %v1375
        %v1952 = vcvt.s32.f32 %v1376
        %v1953 = vcvt.s32.f32 %v1377
        %v1954 = vcvt.s32.f32 %v1378
        %v1955 = vcvt.s32.f32 %v1379
        %v1956 = vcvt.s32.f32 %v1380
        %v1957 = vcvt.s32.f32 %v1381
        %v1958 = vcvt.s32.f32 %v1382
        %v1959 = vcvt.s32.f32 %v1383
        %v1960 = vcvt.s32.f32 %v1384
        %v1961 = vcvt.s32.f32 %v1385
        %v1962 = vcvt.s32.f32 %v1386
        %v1963 = vcvt.s32.f32 %v1387
        %v1964 = vcvt.s32.f32 %v1388
        %v1965 = vcvt.s32.f32 %v1389
        %v1966 = vcvt.s32.f32 %v1390
        %v1967 = vcvt.s32.f32 %v1391
        %v1968 = vcvt.s32.f32 %v1392
        %v1969 = vcvt.s32.f32 %v1393
        %v1970 = vcvt.s32.f32 %v1394
        %v1971 = vcvt.s32.f32 %v1395
        %v1972 = vcvt.s32.f32 %v1396
        %v1973 = vcvt.s32.f32 %v1397
        %v1974 = vcvt.s32.f32 %v1398
        %v1975 = vcvt.s32.f32 %v1399
        %v1976 = vcvt.s32.f32 %v1400
        %v1977 = vcvt.s32.f32 %v1401
        %v1978 = vcvt.s32.f32 %v1402
        %v1979 = vcvt.s32.f32 %v1403
        %v1980 = vcvt.s32.f32 %v1404
        %v1981 = vcvt.s32.f32 %v1405
        %v1982 = vcvt.s32.f32 %v1406
        %v1983 = vcvt.s32.f32 %v1407
        %v1984 = vcvt.s32.f32 %v1408
        %v1985 = vcvt.s32.f32 %v1409
        %v1986 = vcvt.s32.f32 %v1410
        %v1987 = vcvt.s32.f32 %v1411
        %v1988 = vcvt.s32.f32 %v1412
        %v1989 = vcvt.s32.f32 %v1413
        %v1990 = vcvt.s32.f32 %v1414
        %v1991 = vcvt.s32.f32 %v1415
        %v1992 = vcvt.s32.f32 %v1416
        %v1993 = vcvt.s32.f32 %v1417
        %v1994 = vcvt.s32.f32 %v1418
        %v1995 = vcvt.s32.f32 %v1419
        %v1996 = vcvt.s32.f32 %v1420
        %v1997 = vcvt.s32.f32 %v1421
        %v1998 = vcvt.s32.f32 %v1422
        %v1999 = vcvt.s32.f32 %v1423
        %v2000 = vcvt.s32.f32 %v1424
        %v2001 = vcvt.s32.f32 %v1425
        %v2002 = vcvt.s32.f32 %v1426
        %v2003 = vcvt.s32.f32 %v1427
        %v2004 = vcvt.s32.f32 %v1428
        %v2005 = vcvt.s32.f32 %v1429
        %v2006 = vcvt.s32.f32 %v1430
        %v2007 = vcvt.s32.f32 %v1431
        %v2008 = vcvt.s32.f32 %v1432
        %v2009 = vcvt.s32.f32 %v1433
        %v2010 = vcvt.s32.f32 %v1434
        %v2011 = vcvt.s32.f32 %v1435
        %v2012 = vcvt.s32.f32 %v1436
        %v2013 = vcvt.s32.f32 %v1437
        %v2014 = vcvt.s32.f32 %v1438
        %v2015 = vcvt.s32.f32 %v1439
        %v2016 = vcvt.s32.f32 %v1440
        %v2017 = vcvt.s32.f32 %v1441
        %v2018 = vcvt.s32.f32 %v1442
        %v2019 = vcvt.s32.f32 %v1443
        %v2020 = vcvt.s32.f32 %v1444
        %v2021 = vcvt.s32.f32 %v1445
        %v2022 = vcvt.s32.f32 %v1446
        %v2023 = vcvt.s32.f32 %v1447
        %v2024 = vcvt.s32.f32 %v1448
        %v2025 = vcvt.s32.f32 %v1449
        %v2026 = vcvt.s32.f32 %v1450
        %v2027 = vcvt.s32.f32 %v1451
        %v2028 = vcvt.s32.f32 %v1452
        %v2029 = vcvt.s32.f32 %v1453
        %v2030 = vcvt.s32.f32 %v1454
        %v2031 = vcvt.s32.f32 %v1455
        %v2032 = vcvt.s32.f32 %v1456
        %v2033 = vcvt.s32.f32 %v1457
        %v2034 = vcvt.s32.f32 %v1458
        %v2035 = vcvt.s32.f32 %v1459
        %v2036 = vcvt.s32.f32 %v1460
        %v2037 = vcvt.s32.f32 %v1461
        %v2038 = vcvt.s32.f32 %v1462
        %v2039 = vcvt.s32.f32 %v1463
        %v2040 = vcvt.s32.f32 %v1464
        %v2041 = vcvt.s32.f32 %v1465
        %v2042 = vcvt.s32.f32 %v1466
        %v2043 = vcvt.s32.f32 %v1467
        %v2044 = vcvt.s32.f32 %v1468
        %v2045 = vcvt.s32.f32 %v1469
        %v2046 = vcvt.s32.f32 %v1470
        %v2047 = vcvt.s32.f32 %v1471
        %v2048 = vcvt.s32.f32 %v1472
        %v2049 = vcvt.s32.f32 %v1473
        %v2050 = vcvt.s32.f32 %v1474
        %v2051 = vcvt.s32.f32 %v1475
        %v2052 = vcvt.s32.f32 %v1476
        %v2053 = vcvt.s32.f32 %v1477
        %v2054 = vcvt.s32.f32 %v1478
        %v2055 = vcvt.s32.f32 %v1479
        %v2056 = vld [vmem:[%s192] sm:$0xff]
        %v2057 = vld [vmem:[%s192 + $0x8] sm:$0xff]
        %v2058 = vld [vmem:[%s192 + $0x10] sm:$0xff]
        %v2059 = vld [vmem:[%s192 + $0x18] sm:$0xff]
        %v2060 = vld [vmem:[%s192 + $0x20] sm:$0xff]
        %v2061 = vld [vmem:[%s192 + $0x28] sm:$0xff]
        %v2062 = vld [vmem:[%s192 + $0x30] sm:$0xff]
        %v2063 = vld [vmem:[%s192 + $0x38] sm:$0xff]
        %2064 = vmatprep.subr.mxu0 %v1481
        %2065 = vmatpush1.msra.mxu0 %v1480
        %2066 = vmatprep.subr.mxu0 %v1499
        %2067 = vmatpush1.msra.mxu0 %v1498
        %2068 = vmatprep.subr.mxu0 %v1517
        %2069 = vmatpush1.msra.mxu0 %v1516
        %2070 = vmatprep.subr.mxu0 %v1535
        %2071 = vmatpush1.msra.mxu0 %v1534
        %2072 = vmatprep.subr.mxu0 %v1553
        %2073 = vmatpush1.msra.mxu0 %v1552
        %2074 = vmatprep.subr.mxu0 %v1571
        %2075 = vmatpush1.msra.mxu0 %v1570
        %2076 = vmatprep.subr.mxu0 %v1589
        %2077 = vmatpush1.msra.mxu0 %v1588
        %2078 = vmatprep.subr.mxu0 %v1607
        %2079 = vmatpush1.msra.mxu0 %v1606
        %2080 = vmatprep.subr.mxu0 %v1625
        %2081 = vmatpush1.msra.mxu0 %v1624
        %2082 = vmatprep.subr.mxu0 %v1643
        %2083 = vmatpush1.msra.mxu0 %v1642
        %2084 = vmatprep.subr.mxu0 %v1661
        %2085 = vmatpush1.msra.mxu0 %v1660
        %2086 = vmatprep.subr.mxu0 %v1679
        %2087 = vmatpush1.msra.mxu0 %v1678
        %2088 = vmatprep.subr.mxu0 %v1697
        %2089 = vmatpush1.msra.mxu0 %v1696
        %2090 = vmatprep.subr.mxu0 %v1715
        %2091 = vmatpush1.msra.mxu0 %v1714
        %2092 = vmatprep.subr.mxu0 %v1733
        %2093 = vmatpush1.msra.mxu0 %v1732
        %2094 = vmatprep.subr.mxu0 %v1751
        %2095 = vmatpush1.msra.mxu0 %v1750
        %2096 = vmatprep.subr.mxu0 %v1769
        %2097 = vmatpush1.msra.mxu0 %v1768
        %2098 = vmatprep.subr.mxu0 %v1787
        %2099 = vmatpush1.msra.mxu0 %v1786
        %2100 = vmatprep.subr.mxu0 %v1805
        %2101 = vmatpush1.msra.mxu0 %v1804
        %2102 = vmatprep.subr.mxu0 %v1823
        %2103 = vmatpush1.msra.mxu0 %v1822
        %2104 = vmatprep.subr.mxu0 %v1841
        %2105 = vmatpush1.msra.mxu0 %v1840
        %2106 = vmatprep.subr.mxu0 %v1859
        %2107 = vmatpush1.msra.mxu0 %v1858
        %2108 = vmatprep.subr.mxu0 %v1877
        %2109 = vmatpush1.msra.mxu0 %v1876
        %2110 = vmatprep.subr.mxu0 %v1895
        %2111 = vmatpush1.msra.mxu0 %v1894
        %2112 = vmatprep.subr.mxu0 %v1913
        %2113 = vmatpush1.msra.mxu0 %v1912
        %2114 = vmatprep.subr.mxu0 %v1931
        %2115 = vmatpush1.msra.mxu0 %v1930
        %2116 = vmatprep.subr.mxu0 %v1949
        %2117 = vmatpush1.msra.mxu0 %v1948
        %2118 = vmatprep.subr.mxu0 %v1967
        %2119 = vmatpush1.msra.mxu0 %v1966
        %2120 = vmatprep.subr.mxu0 %v1985
        %2121 = vmatpush1.msra.mxu0 %v1984
        %2122 = vmatprep.subr.mxu0 %v2003
        %2123 = vmatpush1.msra.mxu0 %v2002
        %2124 = vmatprep.subr.mxu0 %v2021
        %2125 = vmatpush1.msra.mxu0 %v2020
        %2126 = vmatprep.subr.mxu0 %v2039
        %2127 = vmatpush1.msra.mxu0 %v2038
        %2128 = vmatprep.mubr.f32.mxu0 %v2057
        %2129 = vmatmul.mubr.f32.gmra.mrb[0].mxu0 %v2056
        %v2130 = vpop.f32.mrb[0].mxu0
        %v2131 = vadd.f32 0.0, %v2130
        %v2132 = vpop.f32.mrb[0].mxu0
        %v2133 = vadd.f32 0.0, %v2132
        %2134 = vmatprep.mubr.f32.mxu0 %v2059
        %2135 = vmatmul.mubr.f32.gmra.mrb[0].mxu0 %v2058
        %v2136 = vpop.f32.mrb[0].mxu0
        %v2137 = vadd.f32 0.0, %v2136
        %v2138 = vpop.f32.mrb[0].mxu0
        %v2139 = vadd.f32 0.0, %v2138
        %2140 = vmatprep.mubr.f32.mxu0 %v2061
        %2141 = vmatmul.mubr.f32.gmra.mrb[0].mxu0 %v2060
        %v2142 = vpop.f32.mrb[0].mxu0
        %v2143 = vadd.f32 0.0, %v2142
        %v2144 = vpop.f32.mrb[0].mxu0
        %v2145 = vadd.f32 0.0, %v2144
        %2146 = vmatprep.mubr.f32.mxu0 %v2063
        %2147 = vmatmul.mubr.f32.gmra.mrb[0].mxu0 %v2062
        %v2148 = vpop.f32.mrb[0].mxu0
        %v2149 = vadd.f32 0.0, %v2148
        %v2150 = vpop.f32.mrb[0].mxu0
        %v2151 = vadd.f32 0.0, %v2150
        %2152 = vdwg.mxu0
        %2153 = vmatprep.subr.mxu0 %v1483
        %2154 = vmatpush1.msra.mxu0 %v1482
        %2155 = vmatprep.subr.mxu0 %v1501
        %2156 = vmatpush1.msra.mxu0 %v1500
        %2157 = vmatprep.subr.mxu0 %v1519
        %2158 = vmatpush1.msra.mxu0 %v1518
        %2159 = vmatprep.subr.mxu0 %v1537
        %2160 = vmatpush1.msra.mxu0 %v1536
        %2161 = vmatprep.subr.mxu0 %v1555
        %2162 = vmatpush1.msra.mxu0 %v1554
        %2163 = vmatprep.subr.mxu0 %v1573
        %2164 = vmatpush1.msra.mxu0 %v1572
        %2165 = vmatprep.subr.mxu0 %v1591
        %2166 = vmatpush1.msra.mxu0 %v1590
        %2167 = vmatprep.subr.mxu0 %v1609
        %2168 = vmatpush1.msra.mxu0 %v1608
        %2169 = vmatprep.subr.mxu0 %v1627
        %2170 = vmatpush1.msra.mxu0 %v1626
        %2171 = vmatprep.subr.mxu0 %v1645
        %2172 = vmatpush1.msra.mxu0 %v1644
        %2173 = vmatprep.subr.mxu0 %v1663
        %2174 = vmatpush1.msra.mxu0 %v1662
        %2175 = vmatprep.subr.mxu0 %v1681
        %2176 = vmatpush1.msra.mxu0 %v1680
        %2177 = vmatprep.subr.mxu0 %v1699
        %2178 = vmatpush1.msra.mxu0 %v1698
        %2179 = vmatprep.subr.mxu0 %v1717
        %2180 = vmatpush1.msra.mxu0 %v1716
        %2181 = vmatprep.subr.mxu0 %v1735
        %2182 = vmatpush1.msra.mxu0 %v1734
        %2183 = vmatprep.subr.mxu0 %v1753
        %2184 = vmatpush1.msra.mxu0 %v1752
        %2185 = vmatprep.subr.mxu0 %v1771
        %2186 = vmatpush1.msra.mxu0 %v1770
        %2187 = vmatprep.subr.mxu0 %v1789
        %2188 = vmatpush1.msra.mxu0 %v1788
        %2189 = vmatprep.subr.mxu0 %v1807
        %2190 = vmatpush1.msra.mxu0 %v1806
        %2191 = vmatprep.subr.mxu0 %v1825
        %2192 = vmatpush1.msra.mxu0 %v1824
        %2193 = vmatprep.subr.mxu0 %v1843
        %2194 = vmatpush1.msra.mxu0 %v1842
        %2195 = vmatprep.subr.mxu0 %v1861
        %2196 = vmatpush1.msra.mxu0 %v1860
        %2197 = vmatprep.subr.mxu0 %v1879
        %2198 = vmatpush1.msra.mxu0 %v1878
        %2199 = vmatprep.subr.mxu0 %v1897
        %2200 = vmatpush1.msra.mxu0 %v1896
        %2201 = vmatprep.subr.mxu0 %v1915
        %2202 = vmatpush1.msra.mxu0 %v1914
        %2203 = vmatprep.subr.mxu0 %v1933
        %2204 = vmatpush1.msra.mxu0 %v1932
        %2205 = vmatprep.subr.mxu0 %v1951
        %2206 = vmatpush1.msra.mxu0 %v1950
        %2207 = vmatprep.subr.mxu0 %v1969
        %2208 = vmatpush1.msra.mxu0 %v1968
        %2209 = vmatprep.subr.mxu0 %v1987
        %2210 = vmatpush1.msra.mxu0 %v1986
        %2211 = vmatprep.subr.mxu0 %v2005
        %2212 = vmatpush1.msra.mxu0 %v2004
        %2213 = vmatprep.subr.mxu0 %v2023
        %2214 = vmatpush1.msra.mxu0 %v2022
        %2215 = vmatprep.subr.mxu0 %v2041
        %2216 = vmatpush1.msra.mxu0 %v2040
        %2217 = vmatprep.mubr.f32.mxu0 %v2057
        %2218 = vmatmul.mubr.f32.gmra.mrb[0].mxu0 %v2056
        %v2219 = vpop.f32.mrb[0].mxu0
        %v2220 = vadd.f32 0.0, %v2219
        %v2221 = vpop.f32.mrb[0].mxu0
        %v2222 = vadd.f32 0.0, %v2221
        %2223 = vmatprep.mubr.f32.mxu0 %v2059
        %2224 = vmatmul.mubr.f32.gmra.mrb[0].mxu0 %v2058
        %v2225 = vpop.f32.mrb[0].mxu0
        %v2226 = vadd.f32 0.0, %v2225
        %v2227 = vpop.f32.mrb[0].mxu0
        %v2228 = vadd.f32 0.0, %v2227
        %2229 = vmatprep.mubr.f32.mxu0 %v2061
        %2230 = vmatmul.mubr.f32.gmra.mrb[0].mxu0 %v2060
        %v2231 = vpop.f32.mrb[0].mxu0
        %v2232 = vadd.f32 0.0, %v2231
        %v2233 = vpop.f32.mrb[0].mxu0
        %v2234 = vadd.f32 0.0, %v2233
        %2235 = vmatprep.mubr.f32.mxu0 %v2063
        %2236 = vmatmul.mubr.f32.gmra.mrb[0].mxu0 %v2062
        %v2237 = vpop.f32.mrb[0].mxu0
        %v2238 = vadd.f32 0.0, %v2237
        %v2239 = vpop.f32.mrb[0].mxu0
        %v2240 = vadd.f32 0.0, %v2239
        %2241 = vdwg.mxu0
        %2242 = vmatprep.subr.mxu0 %v1485
        %2243 = vmatpush1.msra.mxu0 %v1484
        %2244 = vmatprep.subr.mxu0 %v1503
        %2245 = vmatpush1.msra.mxu0 %v1502
        %2246 = vmatprep.subr.mxu0 %v1521
        %2247 = vmatpush1.msra.mxu0 %v1520
        %2248 = vmatprep.subr.mxu0 %v1539
        %2249 = vmatpush1.msra.mxu0 %v1538
        %2250 = vmatprep.subr.mxu0 %v1557
        %2251 = vmatpush1.msra.mxu0 %v1556
        %2252 = vmatprep.subr.mxu0 %v1575
        %2253 = vmatpush1.msra.mxu0 %v1574
        %2254 = vmatprep.subr.mxu0 %v1593
        %2255 = vmatpush1.msra.mxu0 %v1592
        %2256 = vmatprep.subr.mxu0 %v1611
        %2257 = vmatpush1.msra.mxu0 %v1610
        %2258 = vmatprep.subr.mxu0 %v1629
        %2259 = vmatpush1.msra.mxu0 %v1628
        %2260 = vmatprep.subr.mxu0 %v1647
        %2261 = vmatpush1.msra.mxu0 %v1646
        %2262 = vmatprep.subr.mxu0 %v1665
        %2263 = vmatpush1.msra.mxu0 %v1664
        %2264 = vmatprep.subr.mxu0 %v1683
        %2265 = vmatpush1.msra.mxu0 %v1682
        %2266 = vmatprep.subr.mxu0 %v1701
        %2267 = vmatpush1.msra.mxu0 %v1700
        %2268 = vmatprep.subr.mxu0 %v1719
        %2269 = vmatpush1.msra.mxu0 %v1718
        %2270 = vmatprep.subr.mxu0 %v1737
        %2271 = vmatpush1.msra.mxu0 %v1736
        %2272 = vmatprep.subr.mxu0 %v1755
        %2273 = vmatpush1.msra.mxu0 %v1754
        %2274 = vmatprep.subr.mxu0 %v1773
        %2275 = vmatpush1.msra.mxu0 %v1772
        %2276 = vmatprep.subr.mxu0 %v1791
        %2277 = vmatpush1.msra.mxu0 %v1790
        %2278 = vmatprep.subr.mxu0 %v1809
        %2279 = vmatpush1.msra.mxu0 %v1808
        %2280 = vmatprep.subr.mxu0 %v1827
        %2281 = vmatpush1.msra.mxu0 %v1826
        %2282 = vmatprep.subr.mxu0 %v1845
        %2283 = vmatpush1.msra.mxu0 %v1844
        %2284 = vmatprep.subr.mxu0 %v1863
        %2285 = vmatpush1.msra.mxu0 %v1862
        %2286 = vmatprep.subr.mxu0 %v1881
        %2287 = vmatpush1.msra.mxu0 %v1880
        %2288 = vmatprep.subr.mxu0 %v1899
        %2289 = vmatpush1.msra.mxu0 %v1898
        %2290 = vmatprep.subr.mxu0 %v1917
        %2291 = vmatpush1.msra.mxu0 %v1916
        %2292 = vmatprep.subr.mxu0 %v1935
        %2293 = vmatpush1.msra.mxu0 %v1934
        %2294 = vmatprep.subr.mxu0 %v1953
        %2295 = vmatpush1.msra.mxu0 %v1952
        %2296 = vmatprep.subr.mxu0 %v1971
        %2297 = vmatpush1.msra.mxu0 %v1970
        %2298 = vmatprep.subr.mxu0 %v1989
        %2299 = vmatpush1.msra.mxu0 %v1988
        %2300 = vmatprep.subr.mxu0 %v2007
        %2301 = vmatpush1.msra.mxu0 %v2006
        %2302 = vmatprep.subr.mxu0 %v2025
        %2303 = vmatpush1.msra.mxu0 %v2024
        %2304 = vmatprep.subr.mxu0 %v2043
        %2305 = vmatpush1.msra.mxu0 %v2042
        %2306 = vmatprep.mubr.f32.mxu0 %v2057
        %2307 = vmatmul.mubr.f32.gmra.mrb[0].mxu0 %v2056
        %v2308 = vpop.f32.mrb[0].mxu0
        %v2309 = vadd.f32 0.0, %v2308
        %v2310 = vpop.f32.mrb[0].mxu0
        %v2311 = vadd.f32 0.0, %v2310
        %2312 = vmatprep.mubr.f32.mxu0 %v2059
        %2313 = vmatmul.mubr.f32.gmra.mrb[0].mxu0 %v2058
        %v2314 = vpop.f32.mrb[0].mxu0
        %v2315 = vadd.f32 0.0, %v2314
        %v2316 = vpop.f32.mrb[0].mxu0
        %v2317 = vadd.f32 0.0, %v2316
        %2318 = vmatprep.mubr.f32.mxu0 %v2061
        %2319 = vmatmul.mubr.f32.gmra.mrb[0].mxu0 %v2060
        %v2320 = vpop.f32.mrb[0].mxu0
        %v2321 = vadd.f32 0.0, %v2320
        %v2322 = vpop.f32.mrb[0].mxu0
        %v2323 = vadd.f32 0.0, %v2322
        %2324 = vmatprep.mubr.f32.mxu0 %v2063
        %2325 = vmatmul.mubr.f32.gmra.mrb[0].mxu0 %v2062
        %v2326 = vpop.f32.mrb[0].mxu0
        %v2327 = vadd.f32 0.0, %v2326
        %v2328 = vpop.f32.mrb[0].mxu0
        %v2329 = vadd.f32 0.0, %v2328
        %2330 = vdwg.mxu0
        %2331 = vmatprep.subr.mxu0 %v1487
        %2332 = vmatpush1.msra.mxu0 %v1486
        %2333 = vmatprep.subr.mxu0 %v1505
        %2334 = vmatpush1.msra.mxu0 %v1504
        %2335 = vmatprep.subr.mxu0 %v1523
        %2336 = vmatpush1.msra.mxu0 %v1522
        %2337 = vmatprep.subr.mxu0 %v1541
        %2338 = vmatpush1.msra.mxu0 %v1540
        %2339 = vmatprep.subr.mxu0 %v1559
        %2340 = vmatpush1.msra.mxu0 %v1558
        %2341 = vmatprep.subr.mxu0 %v1577
        %2342 = vmatpush1.msra.mxu0 %v1576
        %2343 = vmatprep.subr.mxu0 %v1595
        %2344 = vmatpush1.msra.mxu0 %v1594
        %2345 = vmatprep.subr.mxu0 %v1613
        %2346 = vmatpush1.msra.mxu0 %v1612
        %2347 = vmatprep.subr.mxu0 %v1631
        %2348 = vmatpush1.msra.mxu0 %v1630
        %2349 = vmatprep.subr.mxu0 %v1649
        %2350 = vmatpush1.msra.mxu0 %v1648
        %2351 = vmatprep.subr.mxu0 %v1667
        %2352 = vmatpush1.msra.mxu0 %v1666
        %2353 = vmatprep.subr.mxu0 %v1685
        %2354 = vmatpush1.msra.mxu0 %v1684
        %2355 = vmatprep.subr.mxu0 %v1703
        %2356 = vmatpush1.msra.mxu0 %v1702
        %2357 = vmatprep.subr.mxu0 %v1721
        %2358 = vmatpush1.msra.mxu0 %v1720
        %2359 = vmatprep.subr.mxu0 %v1739
        %2360 = vmatpush1.msra.mxu0 %v1738
        %2361 = vmatprep.subr.mxu0 %v1757
        %2362 = vmatpush1.msra.mxu0 %v1756
        %2363 = vmatprep.subr.mxu0 %v1775
        %2364 = vmatpush1.msra.mxu0 %v1774
        %2365 = vmatprep.subr.mxu0 %v1793
        %2366 = vmatpush1.msra.mxu0 %v1792
        %2367 = vmatprep.subr.mxu0 %v1811
        %2368 = vmatpush1.msra.mxu0 %v1810
        %2369 = vmatprep.subr.mxu0 %v1829
        %2370 = vmatpush1.msra.mxu0 %v1828
        %2371 = vmatprep.subr.mxu0 %v1847
        %2372 = vmatpush1.msra.mxu0 %v1846
        %2373 = vmatprep.subr.mxu0 %v1865
        %2374 = vmatpush1.msra.mxu0 %v1864
        %2375 = vmatprep.subr.mxu0 %v1883
        %2376 = vmatpush1.msra.mxu0 %v1882
        %2377 = vmatprep.subr.mxu0 %v1901
        %2378 = vmatpush1.msra.mxu0 %v1900
        %2379 = vmatprep.subr.mxu0 %v1919
        %2380 = vmatpush1.msra.mxu0 %v1918
        %2381 = vmatprep.subr.mxu0 %v1937
        %2382 = vmatpush1.msra.mxu0 %v1936
        %2383 = vmatprep.subr.mxu0 %v1955
        %2384 = vmatpush1.msra.mxu0 %v1954
        %2385 = vmatprep.subr.mxu0 %v1973
        %2386 = vmatpush1.msra.mxu0 %v1972
        %2387 = vmatprep.subr.mxu0 %v1991
        %2388 = vmatpush1.msra.mxu0 %v1990
        %2389 = vmatprep.subr.mxu0 %v2009
        %2390 = vmatpush1.msra.mxu0 %v2008
        %2391 = vmatprep.subr.mxu0 %v2027
        %2392 = vmatpush1.msra.mxu0 %v2026
        %2393 = vmatprep.subr.mxu0 %v2045
        %2394 = vmatpush1.msra.mxu0 %v2044
        %2395 = vmatprep.mubr.f32.mxu0 %v2057
        %2396 = vmatmul.mubr.f32.gmra.mrb[0].mxu0 %v2056
        %v2397 = vpop.f32.mrb[0].mxu0
        %v2398 = vadd.f32 0.0, %v2397
        %v2399 = vpop.f32.mrb[0].mxu0
        %v2400 = vadd.f32 0.0, %v2399
        %2401 = vmatprep.mubr.f32.mxu0 %v2059
        %2402 = vmatmul.mubr.f32.gmra.mrb[0].mxu0 %v2058
        %v2403 = vpop.f32.mrb[0].mxu0
        %v2404 = vadd.f32 0.0, %v2403
        %v2405 = vpop.f32.mrb[0].mxu0
        %v2406 = vadd.f32 0.0, %v2405
        %2407 = vmatprep.mubr.f32.mxu0 %v2061
        %2408 = vmatmul.mubr.f32.gmra.mrb[0].mxu0 %v2060
        %v2409 = vpop.f32.mrb[0].mxu0
        %v2410 = vadd.f32 0.0, %v2409
        %v2411 = vpop.f32.mrb[0].mxu0
        %v2412 = vadd.f32 0.0, %v2411
        %2413 = vmatprep.mubr.f32.mxu0 %v2063
        %2414 = vmatmul.mubr.f32.gmra.mrb[0].mxu0 %v2062
        %v2415 = vpop.f32.mrb[0].mxu0
        %v2416 = vadd.f32 0.0, %v2415
        %v2417 = vpop.f32.mrb[0].mxu0
        %v2418 = vadd.f32 0.0, %v2417
        %2419 = vdwg.mxu0
        %2420 = vmatprep.subr.mxu0 %v1489
        %2421 = vmatpush1.msra.mxu0 %v1488
        %2422 = vmatprep.subr.mxu0 %v1507
        %2423 = vmatpush1.msra.mxu0 %v1506
        %2424 = vmatprep.subr.mxu0 %v1525
        %2425 = vmatpush1.msra.mxu0 %v1524
        %2426 = vmatprep.subr.mxu0 %v1543
        %2427 = vmatpush1.msra.mxu0 %v1542
        %2428 = vmatprep.subr.mxu0 %v1561
        %2429 = vmatpush1.msra.mxu0 %v1560
        %2430 = vmatprep.subr.mxu0 %v1579
        %2431 = vmatpush1.msra.mxu0 %v1578
        %2432 = vmatprep.subr.mxu0 %v1597
        %2433 = vmatpush1.msra.mxu0 %v1596
        %2434 = vmatprep.subr.mxu0 %v1615
        %2435 = vmatpush1.msra.mxu0 %v1614
        %2436 = vmatprep.subr.mxu0 %v1633
        %2437 = vmatpush1.msra.mxu0 %v1632
        %2438 = vmatprep.subr.mxu0 %v1651
        %2439 = vmatpush1.msra.mxu0 %v1650
        %2440 = vmatprep.subr.mxu0 %v1669
        %2441 = vmatpush1.msra.mxu0 %v1668
        %2442 = vmatprep.subr.mxu0 %v1687
        %2443 = vmatpush1.msra.mxu0 %v1686
        %2444 = vmatprep.subr.mxu0 %v1705
        %2445 = vmatpush1.msra.mxu0 %v1704
        %2446 = vmatprep.subr.mxu0 %v1723
        %2447 = vmatpush1.msra.mxu0 %v1722
        %2448 = vmatprep.subr.mxu0 %v1741
        %2449 = vmatpush1.msra.mxu0 %v1740
        %2450 = vmatprep.subr.mxu0 %v1759
        %2451 = vmatpush1.msra.mxu0 %v1758
        %2452 = vmatprep.subr.mxu0 %v1777
        %2453 = vmatpush1.msra.mxu0 %v1776
        %2454 = vmatprep.subr.mxu0 %v1795
        %2455 = vmatpush1.msra.mxu0 %v1794
        %2456 = vmatprep.subr.mxu0 %v1813
        %2457 = vmatpush1.msra.mxu0 %v1812
        %2458 = vmatprep.subr.mxu0 %v1831
        %2459 = vmatpush1.msra.mxu0 %v1830
        %2460 = vmatprep.subr.mxu0 %v1849
        %2461 = vmatpush1.msra.mxu0 %v1848
        %2462 = vmatprep.subr.mxu0 %v1867
        %2463 = vmatpush1.msra.mxu0 %v1866
        %2464 = vmatprep.subr.mxu0 %v1885
        %2465 = vmatpush1.msra.mxu0 %v1884
        %2466 = vmatprep.subr.mxu0 %v1903
        %2467 = vmatpush1.msra.mxu0 %v1902
        %2468 = vmatprep.subr.mxu0 %v1921
        %2469 = vmatpush1.msra.mxu0 %v1920
        %2470 = vmatprep.subr.mxu0 %v1939
        %2471 = vmatpush1.msra.mxu0 %v1938
        %2472 = vmatprep.subr.mxu0 %v1957
        %2473 = vmatpush1.msra.mxu0 %v1956
        %2474 = vmatprep.subr.mxu0 %v1975
        %2475 = vmatpush1.msra.mxu0 %v1974
        %2476 = vmatprep.subr.mxu0 %v1993
        %2477 = vmatpush1.msra.mxu0 %v1992
        %2478 = vmatprep.subr.mxu0 %v2011
        %2479 = vmatpush1.msra.mxu0 %v2010
        %2480 = vmatprep.subr.mxu0 %v2029
        %2481 = vmatpush1.msra.mxu0 %v2028
        %2482 = vmatprep.subr.mxu0 %v2047
        %2483 = vmatpush1.msra.mxu0 %v2046
        %2484 = vmatprep.mubr.f32.mxu0 %v2057
        %2485 = vmatmul.mubr.f32.gmra.mrb[0].mxu0 %v2056
        %v2486 = vpop.f32.mrb[0].mxu0
        %v2487 = vadd.f32 0.0, %v2486
        %v2488 = vpop.f32.mrb[0].mxu0
        %v2489 = vadd.f32 0.0, %v2488
        %2490 = vmatprep.mubr.f32.mxu0 %v2059
        %2491 = vmatmul.mubr.f32.gmra.mrb[0].mxu0 %v2058
        %v2492 = vpop.f32.mrb[0].mxu0
        %v2493 = vadd.f32 0.0, %v2492
        %v2494 = vpop.f32.mrb[0].mxu0
        %v2495 = vadd.f32 0.0, %v2494
        %2496 = vmatprep.mubr.f32.mxu0 %v2061
        %2497 = vmatmul.mubr.f32.gmra.mrb[0].mxu0 %v2060
        %v2498 = vpop.f32.mrb[0].mxu0
        %v2499 = vadd.f32 0.0, %v2498
        %v2500 = vpop.f32.mrb[0].mxu0
        %v2501 = vadd.f32 0.0, %v2500
        %2502 = vmatprep.mubr.f32.mxu0 %v2063
        %2503 = vmatmul.mubr.f32.gmra.mrb[0].mxu0 %v2062
        %v2504 = vpop.f32.mrb[0].mxu0
        %v2505 = vadd.f32 0.0, %v2504
        %v2506 = vpop.f32.mrb[0].mxu0
        %v2507 = vadd.f32 0.0, %v2506
        %2508 = vdwg.mxu0
        %2509 = vmatprep.subr.mxu0 %v1491
        %2510 = vmatpush1.msra.mxu0 %v1490
        %2511 = vmatprep.subr.mxu0 %v1509
        %2512 = vmatpush1.msra.mxu0 %v1508
        %2513 = vmatprep.subr.mxu0 %v1527
        %2514 = vmatpush1.msra.mxu0 %v1526
        %2515 = vmatprep.subr.mxu0 %v1545
        %2516 = vmatpush1.msra.mxu0 %v1544
        %2517 = vmatprep.subr.mxu0 %v1563
        %2518 = vmatpush1.msra.mxu0 %v1562
        %2519 = vmatprep.subr.mxu0 %v1581
        %2520 = vmatpush1.msra.mxu0 %v1580
        %2521 = vmatprep.subr.mxu0 %v1599
        %2522 = vmatpush1.msra.mxu0 %v1598
        %2523 = vmatprep.subr.mxu0 %v1617
        %2524 = vmatpush1.msra.mxu0 %v1616
        %2525 = vmatprep.subr.mxu0 %v1635
        %2526 = vmatpush1.msra.mxu0 %v1634
        %2527 = vmatprep.subr.mxu0 %v1653
        %2528 = vmatpush1.msra.mxu0 %v1652
        %2529 = vmatprep.subr.mxu0 %v1671
        %2530 = vmatpush1.msra.mxu0 %v1670
        %2531 = vmatprep.subr.mxu0 %v1689
        %2532 = vmatpush1.msra.mxu0 %v1688
        %2533 = vmatprep.subr.mxu0 %v1707
        %2534 = vmatpush1.msra.mxu0 %v1706
        %2535 = vmatprep.subr.mxu0 %v1725
        %2536 = vmatpush1.msra.mxu0 %v1724
        %2537 = vmatprep.subr.mxu0 %v1743
        %2538 = vmatpush1.msra.mxu0 %v1742
        %2539 = vmatprep.subr.mxu0 %v1761
        %2540 = vmatpush1.msra.mxu0 %v1760
        %2541 = vmatprep.subr.mxu0 %v1779
        %2542 = vmatpush1.msra.mxu0 %v1778
        %2543 = vmatprep.subr.mxu0 %v1797
        %2544 = vmatpush1.msra.mxu0 %v1796
        %2545 = vmatprep.subr.mxu0 %v1815
        %2546 = vmatpush1.msra.mxu0 %v1814
        %2547 = vmatprep.subr.mxu0 %v1833
        %2548 = vmatpush1.msra.mxu0 %v1832
        %2549 = vmatprep.subr.mxu0 %v1851
        %2550 = vmatpush1.msra.mxu0 %v1850
        %2551 = vmatprep.subr.mxu0 %v1869
        %2552 = vmatpush1.msra.mxu0 %v1868
        %2553 = vmatprep.subr.mxu0 %v1887
        %2554 = vmatpush1.msra.mxu0 %v1886
        %2555 = vmatprep.subr.mxu0 %v1905
        %2556 = vmatpush1.msra.mxu0 %v1904
        %2557 = vmatprep.subr.mxu0 %v1923
        %2558 = vmatpush1.msra.mxu0 %v1922
        %2559 = vmatprep.subr.mxu0 %v1941
        %2560 = vmatpush1.msra.mxu0 %v1940
        %2561 = vmatprep.subr.mxu0 %v1959
        %2562 = vmatpush1.msra.mxu0 %v1958
        %2563 = vmatprep.subr.mxu0 %v1977
        %2564 = vmatpush1.msra.mxu0 %v1976
        %2565 = vmatprep.subr.mxu0 %v1995
        %2566 = vmatpush1.msra.mxu0 %v1994
        %2567 = vmatprep.subr.mxu0 %v2013
        %2568 = vmatpush1.msra.mxu0 %v2012
        %2569 = vmatprep.subr.mxu0 %v2031
        %2570 = vmatpush1.msra.mxu0 %v2030
        %2571 = vmatprep.subr.mxu0 %v2049
        %2572 = vmatpush1.msra.mxu0 %v2048
        %2573 = vmatprep.mubr.f32.mxu0 %v2057
        %2574 = vmatmul.mubr.f32.gmra.mrb[0].mxu0 %v2056
        %v2575 = vpop.f32.mrb[0].mxu0
        %v2576 = vadd.f32 0.0, %v2575
        %v2577 = vpop.f32.mrb[0].mxu0
        %v2578 = vadd.f32 0.0, %v2577
        %2579 = vmatprep.mubr.f32.mxu0 %v2059
        %2580 = vmatmul.mubr.f32.gmra.mrb[0].mxu0 %v2058
        %v2581 = vpop.f32.mrb[0].mxu0
        %v2582 = vadd.f32 0.0, %v2581
        %v2583 = vpop.f32.mrb[0].mxu0
        %v2584 = vadd.f32 0.0, %v2583
        %2585 = vmatprep.mubr.f32.mxu0 %v2061
        %2586 = vmatmul.mubr.f32.gmra.mrb[0].mxu0 %v2060
        %v2587 = vpop.f32.mrb[0].mxu0
        %v2588 = vadd.f32 0.0, %v2587
        %v2589 = vpop.f32.mrb[0].mxu0
        %v2590 = vadd.f32 0.0, %v2589
        %2591 = vmatprep.mubr.f32.mxu0 %v2063
        %2592 = vmatmul.mubr.f32.gmra.mrb[0].mxu0 %v2062
        %v2593 = vpop.f32.mrb[0].mxu0
        %v2594 = vadd.f32 0.0, %v2593
        %v2595 = vpop.f32.mrb[0].mxu0
        %v2596 = vadd.f32 0.0, %v2595
        %2597 = vdwg.mxu0
        %2598 = vmatprep.subr.mxu0 %v1493
        %2599 = vmatpush1.msra.mxu0 %v1492
        %2600 = vmatprep.subr.mxu0 %v1511
        %2601 = vmatpush1.msra.mxu0 %v1510
        %2602 = vmatprep.subr.mxu0 %v1529
        %2603 = vmatpush1.msra.mxu0 %v1528
        %2604 = vmatprep.subr.mxu0 %v1547
        %2605 = vmatpush1.msra.mxu0 %v1546
        %2606 = vmatprep.subr.mxu0 %v1565
        %2607 = vmatpush1.msra.mxu0 %v1564
        %2608 = vmatprep.subr.mxu0 %v1583
        %2609 = vmatpush1.msra.mxu0 %v1582
        %2610 = vmatprep.subr.mxu0 %v1601
        %2611 = vmatpush1.msra.mxu0 %v1600
        %2612 = vmatprep.subr.mxu0 %v1619
        %2613 = vmatpush1.msra.mxu0 %v1618
        %2614 = vmatprep.subr.mxu0 %v1637
        %2615 = vmatpush1.msra.mxu0 %v1636
        %2616 = vmatprep.subr.mxu0 %v1655
        %2617 = vmatpush1.msra.mxu0 %v1654
        %2618 = vmatprep.subr.mxu0 %v1673
        %2619 = vmatpush1.msra.mxu0 %v1672
        %2620 = vmatprep.subr.mxu0 %v1691
        %2621 = vmatpush1.msra.mxu0 %v1690
        %2622 = vmatprep.subr.mxu0 %v1709
        %2623 = vmatpush1.msra.mxu0 %v1708
        %2624 = vmatprep.subr.mxu0 %v1727
        %2625 = vmatpush1.msra.mxu0 %v1726
        %2626 = vmatprep.subr.mxu0 %v1745
        %2627 = vmatpush1.msra.mxu0 %v1744
        %2628 = vmatprep.subr.mxu0 %v1763
        %2629 = vmatpush1.msra.mxu0 %v1762
        %2630 = vmatprep.subr.mxu0 %v1781
        %2631 = vmatpush1.msra.mxu0 %v1780
        %2632 = vmatprep.subr.mxu0 %v1799
        %2633 = vmatpush1.msra.mxu0 %v1798
        %2634 = vmatprep.subr.mxu0 %v1817
        %2635 = vmatpush1.msra.mxu0 %v1816
        %2636 = vmatprep.subr.mxu0 %v1835
        %2637 = vmatpush1.msra.mxu0 %v1834
        %2638 = vmatprep.subr.mxu0 %v1853
        %2639 = vmatpush1.msra.mxu0 %v1852
        %2640 = vmatprep.subr.mxu0 %v1871
        %2641 = vmatpush1.msra.mxu0 %v1870
        %2642 = vmatprep.subr.mxu0 %v1889
        %2643 = vmatpush1.msra.mxu0 %v1888
        %2644 = vmatprep.subr.mxu0 %v1907
        %2645 = vmatpush1.msra.mxu0 %v1906
        %2646 = vmatprep.subr.mxu0 %v1925
        %2647 = vmatpush1.msra.mxu0 %v1924
        %2648 = vmatprep.subr.mxu0 %v1943
        %2649 = vmatpush1.msra.mxu0 %v1942
        %2650 = vmatprep.subr.mxu0 %v1961
        %2651 = vmatpush1.msra.mxu0 %v1960
        %2652 = vmatprep.subr.mxu0 %v1979
        %2653 = vmatpush1.msra.mxu0 %v1978
        %2654 = vmatprep.subr.mxu0 %v1997
        %2655 = vmatpush1.msra.mxu0 %v1996
        %2656 = vmatprep.subr.mxu0 %v2015
        %2657 = vmatpush1.msra.mxu0 %v2014
        %2658 = vmatprep.subr.mxu0 %v2033
        %2659 = vmatpush1.msra.mxu0 %v2032
        %2660 = vmatprep.subr.mxu0 %v2051
        %2661 = vmatpush1.msra.mxu0 %v2050
        %2662 = vmatprep.mubr.f32.mxu0 %v2057
        %2663 = vmatmul.mubr.f32.gmra.mrb[0].mxu0 %v2056
        %v2664 = vpop.f32.mrb[0].mxu0
        %v2665 = vadd.f32 0.0, %v2664
        %v2666 = vpop.f32.mrb[0].mxu0
        %v2667 = vadd.f32 0.0, %v2666
        %2668 = vmatprep.mubr.f32.mxu0 %v2059
        %2669 = vmatmul.mubr.f32.gmra.mrb[0].mxu0 %v2058
        %v2670 = vpop.f32.mrb[0].mxu0
        %v2671 = vadd.f32 0.0, %v2670
        %v2672 = vpop.f32.mrb[0].mxu0
        %v2673 = vadd.f32 0.0, %v2672
        %2674 = vmatprep.mubr.f32.mxu0 %v2061
        %2675 = vmatmul.mubr.f32.gmra.mrb[0].mxu0 %v2060
        %v2676 = vpop.f32.mrb[0].mxu0
        %v2677 = vadd.f32 0.0, %v2676
        %v2678 = vpop.f32.mrb[0].mxu0
        %v2679 = vadd.f32 0.0, %v2678
        %2680 = vmatprep.mubr.f32.mxu0 %v2063
        %2681 = vmatmul.mubr.f32.gmra.mrb[0].mxu0 %v2062
        %v2682 = vpop.f32.mrb[0].mxu0
        %v2683 = vadd.f32 0.0, %v2682
        %v2684 = vpop.f32.mrb[0].mxu0
        %v2685 = vadd.f32 0.0, %v2684
        %2686 = vdwg.mxu0
        %2687 = vmatprep.subr.mxu0 %v1495
        %2688 = vmatpush1.msra.mxu0 %v1494
        %2689 = vmatprep.subr.mxu0 %v1513
        %2690 = vmatpush1.msra.mxu0 %v1512
        %2691 = vmatprep.subr.mxu0 %v1531
        %2692 = vmatpush1.msra.mxu0 %v1530
        %2693 = vmatprep.subr.mxu0 %v1549
        %2694 = vmatpush1.msra.mxu0 %v1548
        %2695 = vmatprep.subr.mxu0 %v1567
        %2696 = vmatpush1.msra.mxu0 %v1566
        %2697 = vmatprep.subr.mxu0 %v1585
        %2698 = vmatpush1.msra.mxu0 %v1584
        %2699 = vmatprep.subr.mxu0 %v1603
        %2700 = vmatpush1.msra.mxu0 %v1602
        %2701 = vmatprep.subr.mxu0 %v1621
        %2702 = vmatpush1.msra.mxu0 %v1620
        %2703 = vmatprep.subr.mxu0 %v1639
        %2704 = vmatpush1.msra.mxu0 %v1638
        %2705 = vmatprep.subr.mxu0 %v1657
        %2706 = vmatpush1.msra.mxu0 %v1656
        %2707 = vmatprep.subr.mxu0 %v1675
        %2708 = vmatpush1.msra.mxu0 %v1674
        %2709 = vmatprep.subr.mxu0 %v1693
        %2710 = vmatpush1.msra.mxu0 %v1692
        %2711 = vmatprep.subr.mxu0 %v1711
        %2712 = vmatpush1.msra.mxu0 %v1710
        %2713 = vmatprep.subr.mxu0 %v1729
        %2714 = vmatpush1.msra.mxu0 %v1728
        %2715 = vmatprep.subr.mxu0 %v1747
        %2716 = vmatpush1.msra.mxu0 %v1746
        %2717 = vmatprep.subr.mxu0 %v1765
        %2718 = vmatpush1.msra.mxu0 %v1764
        %2719 = vmatprep.subr.mxu0 %v1783
        %2720 = vmatpush1.msra.mxu0 %v1782
        %2721 = vmatprep.subr.mxu0 %v1801
        %2722 = vmatpush1.msra.mxu0 %v1800
        %2723 = vmatprep.subr.mxu0 %v1819
        %2724 = vmatpush1.msra.mxu0 %v1818
        %2725 = vmatprep.subr.mxu0 %v1837
        %2726 = vmatpush1.msra.mxu0 %v1836
        %2727 = vmatprep.subr.mxu0 %v1855
        %2728 = vmatpush1.msra.mxu0 %v1854
        %2729 = vmatprep.subr.mxu0 %v1873
        %2730 = vmatpush1.msra.mxu0 %v1872
        %2731 = vmatprep.subr.mxu0 %v1891
        %2732 = vmatpush1.msra.mxu0 %v1890
        %2733 = vmatprep.subr.mxu0 %v1909
        %2734 = vmatpush1.msra.mxu0 %v1908
        %2735 = vmatprep.subr.mxu0 %v1927
        %2736 = vmatpush1.msra.mxu0 %v1926
        %2737 = vmatprep.subr.mxu0 %v1945
        %2738 = vmatpush1.msra.mxu0 %v1944
        %2739 = vmatprep.subr.mxu0 %v1963
        %2740 = vmatpush1.msra.mxu0 %v1962
        %2741 = vmatprep.subr.mxu0 %v1981
        %2742 = vmatpush1.msra.mxu0 %v1980
        %2743 = vmatprep.subr.mxu0 %v1999
        %2744 = vmatpush1.msra.mxu0 %v1998
        %2745 = vmatprep.subr.mxu0 %v2017
        %2746 = vmatpush1.msra.mxu0 %v2016
        %2747 = vmatprep.subr.mxu0 %v2035
        %2748 = vmatpush1.msra.mxu0 %v2034
        %2749 = vmatprep.subr.mxu0 %v2053
        %2750 = vmatpush1.msra.mxu0 %v2052
        %2751 = vmatprep.mubr.f32.mxu0 %v2057
        %2752 = vmatmul.mubr.f32.gmra.mrb[0].mxu0 %v2056
        %v2753 = vpop.f32.mrb[0].mxu0
        %v2754 = vadd.f32 0.0, %v2753
        %v2755 = vpop.f32.mrb[0].mxu0
        %v2756 = vadd.f32 0.0, %v2755
        %2757 = vmatprep.mubr.f32.mxu0 %v2059
        %2758 = vmatmul.mubr.f32.gmra.mrb[0].mxu0 %v2058
        %v2759 = vpop.f32.mrb[0].mxu0
        %v2760 = vadd.f32 0.0, %v2759
        %v2761 = vpop.f32.mrb[0].mxu0
        %v2762 = vadd.f32 0.0, %v2761
        %2763 = vmatprep.mubr.f32.mxu0 %v2061
        %2764 = vmatmul.mubr.f32.gmra.mrb[0].mxu0 %v2060
        %v2765 = vpop.f32.mrb[0].mxu0
        %v2766 = vadd.f32 0.0, %v2765
        %v2767 = vpop.f32.mrb[0].mxu0
        %v2768 = vadd.f32 0.0, %v2767
        %2769 = vmatprep.mubr.f32.mxu0 %v2063
        %2770 = vmatmul.mubr.f32.gmra.mrb[0].mxu0 %v2062
        %v2771 = vpop.f32.mrb[0].mxu0
        %v2772 = vadd.f32 0.0, %v2771
        %v2773 = vpop.f32.mrb[0].mxu0
        %v2774 = vadd.f32 0.0, %v2773
        %2775 = vdwg.mxu0
        %2776 = vmatprep.subr.mxu0 %v1497
        %2777 = vmatpush1.msra.mxu0 %v1496
        %2778 = vmatprep.subr.mxu0 %v1515
        %2779 = vmatpush1.msra.mxu0 %v1514
        %2780 = vmatprep.subr.mxu0 %v1533
        %2781 = vmatpush1.msra.mxu0 %v1532
        %2782 = vmatprep.subr.mxu0 %v1551
        %2783 = vmatpush1.msra.mxu0 %v1550
        %2784 = vmatprep.subr.mxu0 %v1569
        %2785 = vmatpush1.msra.mxu0 %v1568
        %2786 = vmatprep.subr.mxu0 %v1587
        %2787 = vmatpush1.msra.mxu0 %v1586
        %2788 = vmatprep.subr.mxu0 %v1605
        %2789 = vmatpush1.msra.mxu0 %v1604
        %2790 = vmatprep.subr.mxu0 %v1623
        %2791 = vmatpush1.msra.mxu0 %v1622
        %2792 = vmatprep.subr.mxu0 %v1641
        %2793 = vmatpush1.msra.mxu0 %v1640
        %2794 = vmatprep.subr.mxu0 %v1659
        %2795 = vmatpush1.msra.mxu0 %v1658
        %2796 = vmatprep.subr.mxu0 %v1677
        %2797 = vmatpush1.msra.mxu0 %v1676
        %2798 = vmatprep.subr.mxu0 %v1695
        %2799 = vmatpush1.msra.mxu0 %v1694
        %2800 = vmatprep.subr.mxu0 %v1713
        %2801 = vmatpush1.msra.mxu0 %v1712
        %2802 = vmatprep.subr.mxu0 %v1731
        %2803 = vmatpush1.msra.mxu0 %v1730
        %2804 = vmatprep.subr.mxu0 %v1749
        %2805 = vmatpush1.msra.mxu0 %v1748
        %2806 = vmatprep.subr.mxu0 %v1767
        %2807 = vmatpush1.msra.mxu0 %v1766
        %2808 = vmatprep.subr.mxu0 %v1785
        %2809 = vmatpush1.msra.mxu0 %v1784
        %2810 = vmatprep.subr.mxu0 %v1803
        %2811 = vmatpush1.msra.mxu0 %v1802
        %2812 = vmatprep.subr.mxu0 %v1821
        %2813 = vmatpush1.msra.mxu0 %v1820
        %2814 = vmatprep.subr.mxu0 %v1839
        %2815 = vmatpush1.msra.mxu0 %v1838
        %2816 = vmatprep.subr.mxu0 %v1857
        %2817 = vmatpush1.msra.mxu0 %v1856
        %2818 = vmatprep.subr.mxu0 %v1875
        %2819 = vmatpush1.msra.mxu0 %v1874
        %2820 = vmatprep.subr.mxu0 %v1893
        %2821 = vmatpush1.msra.mxu0 %v1892
        %2822 = vmatprep.subr.mxu0 %v1911
        %2823 = vmatpush1.msra.mxu0 %v1910
        %2824 = vmatprep.subr.mxu0 %v1929
        %2825 = vmatpush1.msra.mxu0 %v1928
        %2826 = vmatprep.subr.mxu0 %v1947
        %2827 = vmatpush1.msra.mxu0 %v1946
        %2828 = vmatprep.subr.mxu0 %v1965
        %2829 = vmatpush1.msra.mxu0 %v1964
        %2830 = vmatprep.subr.mxu0 %v1983
        %2831 = vmatpush1.msra.mxu0 %v1982
        %2832 = vmatprep.subr.mxu0 %v2001
        %2833 = vmatpush1.msra.mxu0 %v2000
        %2834 = vmatprep.subr.mxu0 %v2019
        %2835 = vmatpush1.msra.mxu0 %v2018
        %2836 = vmatprep.subr.mxu0 %v2037
        %2837 = vmatpush1.msra.mxu0 %v2036
        %2838 = vmatprep.subr.mxu0 %v2055
        %2839 = vmatpush1.msra.mxu0 %v2054
        %2840 = vmatprep.mubr.f32.mxu0 %v2057
        %2841 = vmatmul.mubr.f32.gmra.mrb[0].mxu0 %v2056
        %v2842 = vpop.f32.mrb[0].mxu0
        %v2843 = vadd.f32 0.0, %v2842
        %v2844 = vpop.f32.mrb[0].mxu0
        %v2845 = vadd.f32 0.0, %v2844
        %2846 = vmatprep.mubr.f32.mxu0 %v2059
        %2847 = vmatmul.mubr.f32.gmra.mrb[0].mxu0 %v2058
        %v2848 = vpop.f32.mrb[0].mxu0
        %v2849 = vadd.f32 0.0, %v2848
        %v2850 = vpop.f32.mrb[0].mxu0
        %v2851 = vadd.f32 0.0, %v2850
        %2852 = vmatprep.mubr.f32.mxu0 %v2061
        %2853 = vmatmul.mubr.f32.gmra.mrb[0].mxu0 %v2060
        %v2854 = vpop.f32.mrb[0].mxu0
        %v2855 = vadd.f32 0.0, %v2854
        %v2856 = vpop.f32.mrb[0].mxu0
        %v2857 = vadd.f32 0.0, %v2856
        %2858 = vmatprep.mubr.f32.mxu0 %v2063
        %2859 = vmatmul.mubr.f32.gmra.mrb[0].mxu0 %v2062
        %v2860 = vpop.f32.mrb[0].mxu0
        %v2861 = vadd.f32 0.0, %v2860
        %v2862 = vpop.f32.mrb[0].mxu0
        %v2863 = vadd.f32 0.0, %v2862
        %2864 = vdwg.mxu0
        %2865 = vst [vmem:[%s217] sm:$0xff] %v2131
        %2866 = vst [vmem:[%s217 + $0x8] sm:$0xff] %v2133
        %2867 = vst [vmem:[%s217 + $0x10] sm:$0xff] %v2220
        %2868 = vst [vmem:[%s217 + $0x18] sm:$0xff] %v2222
        %2869 = vst [vmem:[%s217 + $0x20] sm:$0xff] %v2309
        %2870 = vst [vmem:[%s217 + $0x28] sm:$0xff] %v2311
        %2871 = vst [vmem:[%s217 + $0x30] sm:$0xff] %v2398
        %2872 = vst [vmem:[%s217 + $0x38] sm:$0xff] %v2400
        %2873 = vst [vmem:[%s217 + $0x40] sm:$0xff] %v2487
        %2874 = vst [vmem:[%s217 + $0x48] sm:$0xff] %v2489
        %2875 = vst [vmem:[%s217 + $0x50] sm:$0xff] %v2576
        %2876 = vst [vmem:[%s217 + $0x58] sm:$0xff] %v2578
        %2877 = vst [vmem:[%s217 + $0x60] sm:$0xff] %v2665
        %2878 = vst [vmem:[%s217 + $0x68] sm:$0xff] %v2667
        %2879 = vst [vmem:[%s217 + $0x70] sm:$0xff] %v2754
        %2880 = vst [vmem:[%s217 + $0x78] sm:$0xff] %v2756
        %2881 = vst [vmem:[%s217 + $0x80] sm:$0xff] %v2843
        %2882 = vst [vmem:[%s217 + $0x88] sm:$0xff] %v2845
        %2883 = vst [vmem:[%s217 + $0x90] sm:$0xff] %v2137
        %2884 = vst [vmem:[%s217 + $0x98] sm:$0xff] %v2139
        %2885 = vst [vmem:[%s217 + $0xa0] sm:$0xff] %v2226
        %2886 = vst [vmem:[%s217 + $0xa8] sm:$0xff] %v2228
        %2887 = vst [vmem:[%s217 + $0xb0] sm:$0xff] %v2315
        %2888 = vst [vmem:[%s217 + $0xb8] sm:$0xff] %v2317
        %2889 = vst [vmem:[%s217 + $0xc0] sm:$0xff] %v2404
        %2890 = vst [vmem:[%s217 + $0xc8] sm:$0xff] %v2406
        %2891 = vst [vmem:[%s217 + $0xd0] sm:$0xff] %v2493
        %2892 = vst [vmem:[%s217 + $0xd8] sm:$0xff] %v2495
        %2893 = vst [vmem:[%s217 + $0xe0] sm:$0xff] %v2582
        %2894 = vst [vmem:[%s217 + $0xe8] sm:$0xff] %v2584
        %2895 = vst [vmem:[%s217 + $0xf0] sm:$0xff] %v2671
        %2896 = vst [vmem:[%s217 + $0xf8] sm:$0xff] %v2673
        %2897 = vst [vmem:[%s217 + $0x100] sm:$0xff] %v2760
        %2898 = vst [vmem:[%s217 + $0x108] sm:$0xff] %v2762
        %2899 = vst [vmem:[%s217 + $0x110] sm:$0xff] %v2849
        %2900 = vst [vmem:[%s217 + $0x118] sm:$0xff] %v2851
        %2901 = vst [vmem:[%s217 + $0x120] sm:$0xff] %v2143
        %2902 = vst [vmem:[%s217 + $0x128] sm:$0xff] %v2145
        %2903 = vst [vmem:[%s217 + $0x130] sm:$0xff] %v2232
        %2904 = vst [vmem:[%s217 + $0x138] sm:$0xff] %v2234
        %2905 = vst [vmem:[%s217 + $0x140] sm:$0xff] %v2321
        %2906 = vst [vmem:[%s217 + $0x148] sm:$0xff] %v2323
        %2907 = vst [vmem:[%s217 + $0x150] sm:$0xff] %v2410
        %2908 = vst [vmem:[%s217 + $0x158] sm:$0xff] %v2412
        %2909 = vst [vmem:[%s217 + $0x160] sm:$0xff] %v2499
        %2910 = vst [vmem:[%s217 + $0x168] sm:$0xff] %v2501
        %2911 = vst [vmem:[%s217 + $0x170] sm:$0xff] %v2588
        %2912 = vst [vmem:[%s217 + $0x178] sm:$0xff] %v2590
        %2913 = vst [vmem:[%s217 + $0x180] sm:$0xff] %v2677
        %2914 = vst [vmem:[%s217 + $0x188] sm:$0xff] %v2679
        %2915 = vst [vmem:[%s217 + $0x190] sm:$0xff] %v2766
        %2916 = vst [vmem:[%s217 + $0x198] sm:$0xff] %v2768
        %2917 = vst [vmem:[%s217 + $0x1a0] sm:$0xff] %v2855
        %2918 = vst [vmem:[%s217 + $0x1a8] sm:$0xff] %v2857
        %2919 = vst [vmem:[%s217 + $0x1b0] sm:$0xff] %v2149
        %2920 = vst [vmem:[%s217 + $0x1b8] sm:$0xff] %v2151
        %2921 = vst [vmem:[%s217 + $0x1c0] sm:$0xff] %v2238
        %2922 = vst [vmem:[%s217 + $0x1c8] sm:$0xff] %v2240
        %2923 = vst [vmem:[%s217 + $0x1d0] sm:$0xff] %v2327
        %2924 = vst [vmem:[%s217 + $0x1d8] sm:$0xff] %v2329
        %2925 = vst [vmem:[%s217 + $0x1e0] sm:$0xff] %v2416
        %2926 = vst [vmem:[%s217 + $0x1e8] sm:$0xff] %v2418
        %2927 = vst [vmem:[%s217 + $0x1f0] sm:$0xff] %v2505
        %2928 = vst [vmem:[%s217 + $0x1f8] sm:$0xff] %v2507
        %2929 = vst [vmem:[%s217 + $0x200] sm:$0xff] %v2594
        %2930 = vst [vmem:[%s217 + $0x208] sm:$0xff] %v2596
        %2931 = vst [vmem:[%s217 + $0x210] sm:$0xff] %v2683
        %2932 = vst [vmem:[%s217 + $0x218] sm:$0xff] %v2685
        %2933 = vst [vmem:[%s217 + $0x220] sm:$0xff] %v2772
        %2934 = vst [vmem:[%s217 + $0x228] sm:$0xff] %v2774
        %2935 = vst [vmem:[%s217 + $0x230] sm:$0xff] %v2861
        %2936 = vst [vmem:[%s217 + $0x238] sm:$0xff] %v2863
        %s2937 = sand.u32 %s98, 1
        %s2938 = scalar_lea.sflag [#allocation4], %s2937
        %s2939 = sand.u32 %s98, 1
        %s2940 = smul.addr %s2939, 576
        %s2941 = scalar_lea.vmem [#allocation7], %s2940
        // Predicated region
        $region37: #{tpu_custom_call.1} parent=27 // pred_check
          %p2942 = pneg %p108
        $region38: #{tpu_custom_call.1} parent=27 // pred_check_branch
          %2944 = sbr.rel (%p2942) target = $region40
        $region39: #{tpu_custom_call.1} parent=27 // pred_region
          %s2945 = smul.u32 18, %s27
          %s2947 = ssub.s32 9216, 9216
          %2948 = vsyncadd %s2938, %s2947
          %s2949 = smul.addr %s26, 72
          %s2950 = sadd.s32 %s2945, %s2949
          %s2951 = smul.addr %s2950, 128
          %s2952 = scalar_lea.hbm %s2, %s2951
          %s2953 = sshll.u32 %s2941, 4
          %s2954 = int_to_ptr.vmem [resolvable:$true] %s2953
          %2959 = dma.vmem_to_hbm [thread:$0]  %s2954, 9216, %s2952, %s2938, 2304, 2304, 144
        $region40: #{tpu_custom_call.1} parent=27 // pred_fallthru
          _
      $region28: #{tpu_custom_call.1} parent=5 // pred_fallthru
        _
      %p2960 = scmp.le.s32.totalorder 2, %s17
      // Predicated region
      $region41: #{tpu_custom_call.1} parent=5 // pred_check
        %p2961 = pneg %p2960
      $region42: #{tpu_custom_call.1} parent=5 // pred_check_branch
        %2963 = sbr.rel (%p2961) target = $region44
      $region43: #{tpu_custom_call.1} parent=5 // pred_region
        %s2964 = ssub.s32 %s17, 2
        // Predicated region
        $region45: #{tpu_custom_call.1} parent=43 // pred_check
          %p2965 = pneg %p114
        $region46: #{tpu_custom_call.1} parent=43 // pred_check_branch
          %2967 = sbr.rel (%p2965) target = $region48
        $region47: #{tpu_custom_call.1} parent=43 // pred_region
          %s2968 = sand.u32 %s99, 1
          %s2969 = scalar_lea.sflag [#allocation4], %s2968
          %s2970 = sand.u32 %s99, 1
          %s2971 = smul.addr %s2970, 576
          %s2972 = scalar_lea.vmem [#allocation7], %s2971
          %2973 = dma.done %s2969, 9216
        $region48: #{tpu_custom_call.1} parent=43 // pred_fallthru
          _
      $region44: #{tpu_custom_call.1} parent=5 // pred_fallthru
        _
    $region6: #{tpu_custom_call.1} parent=1 // loop_footer
      %s21 = sadd.s32 1, %s17
    $region7: #{tpu_custom_call.1} parent=1 // loop_footer_branch
      %16 = sbr.rel target = $region3
    $region8: #{tpu_custom_call.1} parent=1 // loop_exit
      _
    %2974 = vsyncpa [#allocation3], 1
    %s2975 = scalar_lea.sflag [#allocation3], 1
    %2976 = vsyncpa %s2975, 1
    %2977 = vsyncpa [#allocation6], 1
    %s2978 = scalar_lea.sflag [#allocation6], 1
    %2979 = vsyncpa %s2978, 1
    %2980 = vsyncpa [#allocation4], 1
    %s2981 = scalar_lea.sflag [#allocation4], 1
    %2982 = vsyncpa %s2981, 1

</llo_original>
